<compile_context>
chip_gen: v7x
topology: tpu7x:2x2x1
jax: 0.10.0
libtpu: 0.0.40
codegen_flags: <defaults>
</compile_context>

<pallas_src>
import functools

import jax
import jax.numpy as jnp
from jax.experimental import pallas as pl
from jax.experimental.pallas import tpu as pltpu

LANE = 128
SUBLANE = 8


def _round_up(x, m):
    return (x + m - 1) // m * m


def _pad2(a, rows, cols):
    return jnp.pad(a, ((0, rows - a.shape[0]), (0, cols - a.shape[1])))


# ---------------------------------------------------------------------------
# Shared per-step math (one GRU+MLP step on a [TB, *] batch tile).
# ---------------------------------------------------------------------------
def _gru_mlp_step(Hp, obs, h_in, w1, b1, wgi, bgi, wgh, bgh, w2, b2, w3, b3,
                  amask):
    f32 = jnp.float32
    mdt = w1.dtype                       # matmul operand dtype (f32 or bf16)

    # fc1 + relu (f32 accumulate / bias / relu)
    x = jnp.dot(obs.astype(mdt), w1, preferred_element_type=f32) + b1
    x = jnp.maximum(x, 0.0)

    # GRUCell, gate columns laid out [ r | z | n ] (each Hp wide, lane-aligned):
    #   r  = sigmoid(W_ir x + b_ir + W_hr h + b_hr)
    #   z  = sigmoid(W_iz x + b_iz + W_hz h + b_hz)
    #   n  = tanh((W_in x + b_in) + r * (W_hn h + b_hn))
    #   h' = (1 - z) * n + z * h
    gi = jnp.dot(x.astype(mdt), wgi, preferred_element_type=f32) + bgi
    gh = jnp.dot(h_in.astype(mdt), wgh, preferred_element_type=f32) + bgh
    r = jax.nn.sigmoid(gi[:, 0 * Hp:1 * Hp] + gh[:, 0 * Hp:1 * Hp])
    z = jax.nn.sigmoid(gi[:, 1 * Hp:2 * Hp] + gh[:, 1 * Hp:2 * Hp])
    n = jnp.tanh(gi[:, 2 * Hp:3 * Hp] + r * gh[:, 2 * Hp:3 * Hp])
    h = jnp.maximum((1.0 - z) * n + z * h_in, 0.0)   # F.relu(self.rnn(x, h_in))

    # fc2 + relu
    y = jnp.dot(h.astype(mdt), w2, preferred_element_type=f32) + b2
    y = jnp.maximum(y, 0.0)

    # fc3
    logits = jnp.dot(y.astype(mdt), w3, preferred_element_type=f32) + b3

    # pi = softmax(exp(logits), dim=-1).  Padded action lanes have logits==0
    # -> e==1, which is still a valid upper bound for the max shift; they are
    # zeroed via the precomputed mask before the sum.
    e = jnp.exp(logits)                              # same double-exp as module
    m = jnp.max(e, axis=-1, keepdims=True)
    p = jnp.exp(e - m) * amask
    s = jnp.sum(p, axis=-1, keepdims=True)
    inv = pl.reciprocal(s, approx=True)
    inv = inv * (2.0 - s * inv)                      # one Newton step -> ~f32
    pi = p * inv
    return pi, h


def _forward_kernel(Hp, obs_ref, h_ref, w1, b1, wgi, bgi, wgh, bgh,
                    w2, b2, w3, b3, amask, pi_ref, hout_ref):
    pi, h = _gru_mlp_step(Hp, obs_ref[...], h_ref[...],
                          w1[...], b1[...], wgi[...], bgi[...],
                          wgh[...], bgh[...], w2[...], b2[...],
                          w3[...], b3[...], amask[...])
    pi_ref[...] = pi
    hout_ref[...] = h


def _rollout_kernel(Hp, obs_ref, h0_ref, w1, b1, wgi, bgi, wgh, bgh,
                    w2, b2, w3, b3, amask, pi_ref, hfin_ref, h_scr):
    # Hidden state lives in VMEM scratch across the (inner, "arbitrary") time
    # axis; it is (re)initialized from the h0 block at t == 0 of each batch
    # block.  Weights stay VMEM-resident for the whole rollout.
    @pl.when(pl.program_id(1) == 0)
    def _():
        h_scr[...] = h0_ref[...]

    pi, h = _gru_mlp_step(Hp, obs_ref[...], h_scr[...],
                          w1[...], b1[...], wgi[...], bgi[...],
                          wgh[...], bgh[...], w2[...], b2[...],
                          w3[...], b3[...], amask[...])
    h_scr[...] = h
    hfin_ref[...] = h
    pi_ref[...] = pi


# ---------------------------------------------------------------------------
# Parameter preparation (pad / cast once, ahead of all forward calls).
# ---------------------------------------------------------------------------
def prepare_params(params, matmul_dtype=jnp.float32):
    """Pad feature dims to lane multiples and cast matmul operands.

    bf16 operands are fine on every TPU generation (v5e+ MXU runs bf16 at full
    rate); all element-wise math and accumulation stays f32.
    """
    f32 = jnp.float32
    d_in, H = params["w1"].shape
    A = params["w3"].shape[1]
    Dp = _round_up(d_in, LANE)
    Hp = _round_up(H, LANE)
    Ap = _round_up(A, LANE)

    def gates_w(w):          # [H, 3H] (transposed) -> [Hp, 3Hp], gates [r|z|n]
        return jnp.concatenate(
            [_pad2(w[:, i * H:(i + 1) * H], Hp, Hp) for i in range(3)], axis=1)

    def gates_b(b):          # [1, 3H] -> [1, 3Hp]
        return jnp.concatenate(
            [_pad2(b[:, i * H:(i + 1) * H], 1, Hp) for i in range(3)], axis=1)

    md = matmul_dtype
    amask = (jnp.arange(Ap) < A).astype(f32).reshape(1, Ap)
    return {
        "meta": (d_in, H, A, Dp, Hp, Ap),
        "w1":  _pad2(params["w1"], Dp, Hp).astype(md),
        "b1":  _pad2(params["b1"], 1, Hp).astype(f32),
        "wgi": gates_w(params["w_ih"]).astype(md),
        "bgi": gates_b(params["b_ih"]).astype(f32),
        "wgh": gates_w(params["w_hh"]).astype(md),
        "bgh": gates_b(params["b_hh"]).astype(f32),
        "w2":  _pad2(params["w2"], Hp, Hp).astype(md),
        "b2":  _pad2(params["b2"], 1, Hp).astype(f32),
        "w3":  _pad2(params["w3"], Hp, Ap).astype(md),
        "b3":  _pad2(params["b3"], 1, Ap).astype(f32),
        "amask": amask,
    }


# ---------------------------------------------------------------------------
# Tiling / VMEM helpers.
# ---------------------------------------------------------------------------
def _batch_tiles(B, block_b):
    """Batch tile: multiple of 16 (bf16 sublane packing); prefer >=2 grid
    steps so the "parallel" batch axis can shard across TensorCores."""
    b16 = _round_up(B, 16)
    cap = max(16, _round_up(block_b, 16))
    nb = pl.cdiv(b16, cap)
    if nb == 1 and b16 >= 32:
        nb = 2
    TB = _round_up(pl.cdiv(b16, nb), 16)
    nb = pl.cdiv(b16, TB)
    return TB, nb * TB, nb


def _vmem_budget(prep, TB, Dp, Hp, Ap):
    wnames = ("w1", "b1", "wgi", "bgi", "wgh", "bgh", "w2", "b2", "w3", "b3",
              "amask")
    weight_bytes = sum(prep[k].size * prep[k].dtype.itemsize for k in wnames)
    obs_isz = jnp.dtype(prep["w1"].dtype).itemsize
    # Streamed, double-buffered blocks: obs + h_in inputs, pi + h outputs.
    stream = 2 * TB * (Dp * obs_isz + 4 * Hp + 4 * Ap + 4 * Hp)
    # f32 in-kernel intermediates: x, gi(3Hp), gh(3Hp), r/z/n, h, y, scratch h,
    # and the softmax temps on the Ap lanes.
    interm = 4 * TB * (13 * Hp + 4 * Ap)
    limit = 2 * weight_bytes + stream + interm + (2 << 20)
    try:
        cap = int(pltpu.get_tpu_info().vmem_capacity_bytes)
    except Exception:
        cap = 64 << 20
    return max(16 << 20, min(limit, cap // 8 * 7))


def _make_weight_spec(const_map, weight_buffers):
    def wspec(shape):
        if weight_buffers == 1:
            # Single-buffer the VMEM-resident weights: their block index never
            # changes, so the second pipeline buffer is pure VMEM waste.
            return pl.BlockSpec(shape, const_map, pipeline_mode=pl.Buffered(1))
        return pl.BlockSpec(shape, const_map)
    return wspec


def _call_with_weight_fallback(run):
    try:
        return run(1)
    except Exception:  # pl.Buffered(1) rejected by this Pallas build
        return run(2)


# ---------------------------------------------------------------------------
# Single step: matches DNNAgent.forward(obs, hidden) with rnn=True, soft=True.
# ---------------------------------------------------------------------------
def dnn_agent_forward(obs, hidden, prep, *, block_b=512):
    """obs [B, d_in], hidden [B, H]  ->  (pi [B, n_action], h [B, H])."""
    d_in, H, A, Dp, Hp, Ap = prep["meta"]
    B = obs.shape[0]
    assert obs.shape == (B, d_in) and hidden.shape == (B, H)
    mdt = prep["w1"].dtype

    TB, Bp, nb = _batch_tiles(B, block_b)
    vmem_limit = _vmem_budget(prep, TB, Dp, Hp, Ap)

    def run(weight_buffers):
        obs_p = _pad2(obs, Bp, Dp).astype(mdt)              # stream obs in mdt
        hid_p = _pad2(hidden.astype(jnp.float32), Bp, Hp)   # f32 (GRU math)
        batch_map = lambda i: (i, 0)
        const_map = lambda i: (0, 0)
        wspec = _make_weight_spec(const_map, weight_buffers)
        in_specs = [
            pl.BlockSpec((TB, Dp), batch_map),              # obs
            pl.BlockSpec((TB, Hp), batch_map),              # hidden (aliased)
            wspec((Dp, Hp)), wspec((1, Hp)),                # fc1
            wspec((Hp, 3 * Hp)), wspec((1, 3 * Hp)),        # GRU input weights
            wspec((Hp, 3 * Hp)), wspec((1, 3 * Hp)),        # GRU hidden weights
            wspec((Hp, Hp)), wspec((1, Hp)),                # fc2
            wspec((Hp, Ap)), wspec((1, Ap)),                # fc3
            wspec((1, Ap)),                                 # action-lane mask
        ]
        out_specs = (pl.BlockSpec((TB, Ap), batch_map),     # pi (lane-dense)
                     pl.BlockSpec((TB, Hp), batch_map))     # h
        out_shape = (jax.ShapeDtypeStruct((Bp, Ap), jnp.float32),
                     jax.ShapeDtypeStruct((Bp, Hp), jnp.float32))
        return pl.pallas_call(
            functools.partial(_forward_kernel, Hp),
            grid=(nb,),
            in_specs=in_specs,
            out_specs=out_specs,
            out_shape=out_shape,
            input_output_aliases={1: 1},       # hidden state updated in place
            compiler_params=pltpu.CompilerParams(
                dimension_semantics=("parallel",),
                vmem_limit_bytes=vmem_limit),
        )(obs_p, hid_p, prep["w1"], prep["b1"], prep["wgi"], prep["bgi"],
          prep["wgh"], prep["bgh"], prep["w2"], prep["b2"],
          prep["w3"], prep["b3"], prep["amask"])

    pi_p, h_p = _call_with_weight_fallback(run)
    # TODO(synk): expose a padded-state variant (keep h in [Bp, Hp] between
    # calls) for callers that loop this per-step API; dnn_agent_rollout already
    # removes the per-step pad/slice HBM round trip for full rollouts.
    return pi_p[:B, :A], h_p[:B, :H]


# ---------------------------------------------------------------------------
# Sequential rollout with the time loop inside the kernel.
# ---------------------------------------------------------------------------
def dnn_agent_rollout(obs_seq, hidden, prep, *, block_b=512):
    """obs_seq [T, B, d_in], hidden [B, H] -> (pi [T, B, n_action], h_T [B, H]).

    Weights stay VMEM-resident across all T steps and the recurrent state is
    carried in VMEM scratch (no per-step h HBM round trip)."""
    d_in, H, A, Dp, Hp, Ap = prep["meta"]
    T, B, _ = obs_seq.shape
    assert obs_seq.shape == (T, B, d_in) and hidden.shape == (B, H)
    mdt = prep["w1"].dtype

    TB, Bp, nb = _batch_tiles(B, block_b)
    vmem_limit = _vmem_budget(prep, TB, Dp, Hp, Ap)

    def run(weight_buffers):
        obs_p = jnp.pad(obs_seq,
                        ((0, 0), (0, Bp - B), (0, Dp - d_in))).astype(mdt)
        hid_p = _pad2(hidden.astype(jnp.float32), Bp, Hp)
        obs_map = lambda i, t: (t, i, 0)
        h_map = lambda i, t: (i, 0)
        const_map = lambda i, t: (0, 0)
        wspec = _make_weight_spec(const_map, weight_buffers)
        in_specs = [
            pl.BlockSpec((None, TB, Dp), obs_map),          # obs[t]
            pl.BlockSpec((TB, Hp), h_map),                  # h0
            wspec((Dp, Hp)), wspec((1, Hp)),
            wspec((Hp, 3 * Hp)), wspec((1, 3 * Hp)),
            wspec((Hp, 3 * Hp)), wspec((1, 3 * Hp)),
            wspec((Hp, Hp)), wspec((1, Hp)),
            wspec((Hp, Ap)), wspec((1, Ap)),
            wspec((1, Ap)),
        ]
        out_specs = (pl.BlockSpec((None, TB, Ap), obs_map), # pi[t]
                     pl.BlockSpec((TB, Hp), h_map))         # final h
        out_shape = (jax.ShapeDtypeStruct((T, Bp, Ap), jnp.float32),
                     jax.ShapeDtypeStruct((Bp, Hp), jnp.float32))
        return pl.pallas_call(
            functools.partial(_rollout_kernel, Hp),
            grid=(nb, T),                                   # time innermost
            in_specs=in_specs,
            out_specs=out_specs,
            out_shape=out_shape,
            scratch_shapes=[pltpu.VMEM((TB, Hp), jnp.float32)],
            compiler_params=pltpu.CompilerParams(
                dimension_semantics=("parallel", "arbitrary"),
                vmem_limit_bytes=vmem_limit),
        )(obs_p, hid_p, prep["w1"], prep["b1"], prep["wgi"], prep["bgi"],
          prep["wgh"], prep["bgh"], prep["w2"], prep["b2"],
          prep["w3"], prep["b3"], prep["amask"])

    pi_p, h_p = _call_with_weight_fallback(run)
    return pi_p[:, :B, :A], h_p[:B, :H]


# ---------------------------------------------------------------------------
# Parameter init (PyTorch-style uniform) and pure-JAX reference.
# ---------------------------------------------------------------------------
def init_params(key, d_in, hidden, n_action):
    ks = jax.random.split(key, 10)

    def u(k, shape, fan_in):
        bound = 1.0 / jnp.sqrt(jnp.float32(fan_in))
        return jax.random.uniform(k, shape, jnp.float32, -bound, bound)

    # Weights stored transposed ([in, out]) relative to PyTorch's [out, in].
    return {
        "w1":   u(ks[0], (d_in, hidden), d_in),
        "b1":   u(ks[1], (1, hidden), d_in),
        "w_ih": u(ks[2], (hidden, 3 * hidden), hidden),
        "b_ih": u(ks[3], (1, 3 * hidden), hidden),
        "w_hh": u(ks[4], (hidden, 3 * hidden), hidden),
        "b_hh": u(ks[5], (1, 3 * hidden), hidden),
        "w2":   u(ks[6], (hidden, hidden), hidden),
        "b2":   u(ks[7], (1, hidden), hidden),
        "w3":   u(ks[8], (hidden, n_action), hidden),
        "b3":   u(ks[9], (1, n_action), hidden),
    }


def reference_forward(obs, hidden, p, matmul_dtype=jnp.float32):
    """Pure-JAX reference mirroring the PyTorch forward (rnn=True, soft=True),
    with matmul operands in `matmul_dtype` and f32 accumulation."""
    H = p["w1"].shape[1]
    md = matmul_dtype

    def mm(a, w):
        return jnp.dot(a.astype(md), w.astype(md),
                       preferred_element_type=jnp.float32)

    x = jax.nn.relu(mm(obs, p["w1"]) + p["b1"])
    gi = mm(x, p["w_ih"]) + p["b_ih"]
    gh = mm(hidden, p["w_hh"]) + p["b_hh"]
    r = jax.nn.sigmoid(gi[:, :H] + gh[:, :H])
    z = jax.nn.sigmoid(gi[:, H:2 * H] + gh[:, H:2 * H])
    n = jnp.tanh(gi[:, 2 * H:] + r * gh[:, 2 * H:])
    h = jax.nn.relu((1.0 - z) * n + z * hidden)
    y = jax.nn.relu(mm(h, p["w2"]) + p["b2"])
    logits = mm(y, p["w3"]) + p["b3"]
    pi = jax.nn.softmax(jnp.exp(logits), axis=-1)
    return pi, h


if __name__ == "__main__":
    B, D_IN, HIDDEN, N_ACTION, T = 2, 16, 32, 8, 8

    key = jax.random.PRNGKey(0)
    k_obs, k_hid, k_params, k_seq = jax.random.split(key, 4)

    obs = jax.random.normal(k_obs, (B, D_IN), jnp.float32)
    # Non-negative hidden (as produced by a previous relu'd GRU step).
    hidden = jax.nn.relu(jax.random.normal(k_hid, (B, HIDDEN), jnp.float32))
    params = init_params(k_params, D_IN, HIDDEN, N_ACTION)

    # ---- exact f32 path (matches PyTorch numerics) ----
    prep_f32 = prepare_params(params, matmul_dtype=jnp.float32)
    pi, h = dnn_agent_forward(obs, hidden, prep_f32)
    jax.block_until_ready((pi, h))

    pi_ref, h_ref = reference_forward(obs, hidden, params, jnp.float32)
    assert jnp.allclose(pi, pi_ref, atol=1e-4, rtol=1e-4)
    assert jnp.allclose(h, h_ref, atol=1e-5, rtol=1e-5)

    # ---- bf16 MXU-operand path (valid on v5e/v6e/v7x), f32 accumulation ----
    prep_bf16 = prepare_params(params, matmul_dtype=jnp.bfloat16)
    pi16, h16 = dnn_agent_forward(obs, hidden, prep_bf16)
    jax.block_until_ready((pi16, h16))

    pi_ref16, h_ref16 = reference_forward(obs, hidden, params, jnp.bfloat16)
    assert jnp.allclose(pi16, pi_ref16, atol=2e-3, rtol=2e-3)
    assert jnp.allclose(h16, h_ref16, atol=2e-3, rtol=2e-3)

    # ---- sequential rollout: time loop inside the kernel ----
    obs_seq = jax.random.normal(k_seq, (T, B, D_IN), jnp.float32)
    pi_seq, h_T = dnn_agent_rollout(obs_seq, hidden, prep_f32)
    jax.block_until_ready((pi_seq, h_T))

    h_cur = hidden
    pis = []
    for t in range(T):
        p_t, h_cur = reference_forward(obs_seq[t], h_cur, params, jnp.float32)
        pis.append(p_t)
    pi_seq_ref = jnp.stack(pis, axis=0)
    assert jnp.allclose(pi_seq, pi_seq_ref, atol=1e-4, rtol=1e-4)
    assert jnp.allclose(h_T, h_cur, atol=1e-4, rtol=1e-4)

    print("KERNEL_OK")
</pallas_src>

<mosaic_0001>
module attributes {stable_mosaic.version = 11 : i64} {
  func.func @_forward_kernel(%arg0: i32, %arg1: memref<16x128xf32, #tpu.memory_space<vmem>>, %arg2: memref<16x128xf32, #tpu.memory_space<vmem>>, %arg3: memref<128x128xf32, #tpu.memory_space<vmem>>, %arg4: memref<1x128xf32, #tpu.memory_space<vmem>>, %arg5: memref<128x384xf32, #tpu.memory_space<vmem>>, %arg6: memref<1x384xf32, #tpu.memory_space<vmem>>, %arg7: memref<128x384xf32, #tpu.memory_space<vmem>>, %arg8: memref<1x384xf32, #tpu.memory_space<vmem>>, %arg9: memref<128x128xf32, #tpu.memory_space<vmem>>, %arg10: memref<1x128xf32, #tpu.memory_space<vmem>>, %arg11: memref<128x128xf32, #tpu.memory_space<vmem>>, %arg12: memref<1x128xf32, #tpu.memory_space<vmem>>, %arg13: memref<1x128xf32, #tpu.memory_space<vmem>>, %arg14: memref<16x128xf32, #tpu.memory_space<vmem>>, %arg15: memref<16x128xf32, #tpu.memory_space<vmem>>) attributes {dimension_semantics = [#tpu.dimension_semantics<parallel>], iteration_bounds = array<i64: 1>, scalar_prefetch = 0 : i64, scratch_operands = 0 : i64, tpu.core_type = #tpu.core_type<tc>, window_params = [{transform_indices = @transform_0, window_bounds = array<i64: 16, 128>}, {transform_indices = @transform_1, window_bounds = array<i64: 16, 128>}, {pipeline_mode = #tpu.pipeline_mode<synchronous>, transform_indices = @transform_2, window_bounds = array<i64: 128, 128>}, {pipeline_mode = #tpu.pipeline_mode<synchronous>, transform_indices = @transform_3, window_bounds = array<i64: 1, 128>}, {pipeline_mode = #tpu.pipeline_mode<synchronous>, transform_indices = @transform_4, window_bounds = array<i64: 128, 384>}, {pipeline_mode = #tpu.pipeline_mode<synchronous>, transform_indices = @transform_5, window_bounds = array<i64: 1, 384>}, {pipeline_mode = #tpu.pipeline_mode<synchronous>, transform_indices = @transform_6, window_bounds = array<i64: 128, 384>}, {pipeline_mode = #tpu.pipeline_mode<synchronous>, transform_indices = @transform_7, window_bounds = array<i64: 1, 384>}, {pipeline_mode = #tpu.pipeline_mode<synchronous>, transform_indices = @transform_8, window_bounds = array<i64: 128, 128>}, {pipeline_mode = #tpu.pipeline_mode<synchronous>, transform_indices = @transform_9, window_bounds = array<i64: 1, 128>}, {pipeline_mode = #tpu.pipeline_mode<synchronous>, transform_indices = @transform_10, window_bounds = array<i64: 128, 128>}, {pipeline_mode = #tpu.pipeline_mode<synchronous>, transform_indices = @transform_11, window_bounds = array<i64: 1, 128>}, {pipeline_mode = #tpu.pipeline_mode<synchronous>, transform_indices = @transform_12, window_bounds = array<i64: 1, 128>}, {transform_indices = @transform_13, window_bounds = array<i64: 16, 128>}, {transform_indices = @transform_14, window_bounds = array<i64: 16, 128>}]} {
    %c0 = arith.constant 0 : index
    %c0_0 = arith.constant 0 : index
    %0 = vector.load %arg1[%c0, %c0_0] : memref<16x128xf32, #tpu.memory_space<vmem>>, vector<16x128xf32>
    %c0_1 = arith.constant 0 : index
    %c0_2 = arith.constant 0 : index
    %1 = vector.load %arg2[%c0_1, %c0_2] : memref<16x128xf32, #tpu.memory_space<vmem>>, vector<16x128xf32>
    %c0_3 = arith.constant 0 : index
    %c0_4 = arith.constant 0 : index
    %2 = vector.load %arg3[%c0_3, %c0_4] : memref<128x128xf32, #tpu.memory_space<vmem>>, vector<128x128xf32>
    %c0_5 = arith.constant 0 : index
    %c0_6 = arith.constant 0 : index
    %3 = vector.load %arg4[%c0_5, %c0_6] : memref<1x128xf32, #tpu.memory_space<vmem>>, vector<1x128xf32>
    %c0_7 = arith.constant 0 : index
    %c0_8 = arith.constant 0 : index
    %4 = vector.load %arg5[%c0_7, %c0_8] : memref<128x384xf32, #tpu.memory_space<vmem>>, vector<128x384xf32>
    %c0_9 = arith.constant 0 : index
    %c0_10 = arith.constant 0 : index
    %5 = vector.load %arg6[%c0_9, %c0_10] : memref<1x384xf32, #tpu.memory_space<vmem>>, vector<1x384xf32>
    %c0_11 = arith.constant 0 : index
    %c0_12 = arith.constant 0 : index
    %6 = vector.load %arg7[%c0_11, %c0_12] : memref<128x384xf32, #tpu.memory_space<vmem>>, vector<128x384xf32>
    %c0_13 = arith.constant 0 : index
    %c0_14 = arith.constant 0 : index
    %7 = vector.load %arg8[%c0_13, %c0_14] : memref<1x384xf32, #tpu.memory_space<vmem>>, vector<1x384xf32>
    %c0_15 = arith.constant 0 : index
    %c0_16 = arith.constant 0 : index
    %8 = vector.load %arg9[%c0_15, %c0_16] : memref<128x128xf32, #tpu.memory_space<vmem>>, vector<128x128xf32>
    %c0_17 = arith.constant 0 : index
    %c0_18 = arith.constant 0 : index
    %9 = vector.load %arg10[%c0_17, %c0_18] : memref<1x128xf32, #tpu.memory_space<vmem>>, vector<1x128xf32>
    %c0_19 = arith.constant 0 : index
    %c0_20 = arith.constant 0 : index
    %10 = vector.load %arg11[%c0_19, %c0_20] : memref<128x128xf32, #tpu.memory_space<vmem>>, vector<128x128xf32>
    %c0_21 = arith.constant 0 : index
    %c0_22 = arith.constant 0 : index
    %11 = vector.load %arg12[%c0_21, %c0_22] : memref<1x128xf32, #tpu.memory_space<vmem>>, vector<1x128xf32>
    %c0_23 = arith.constant 0 : index
    %c0_24 = arith.constant 0 : index
    %12 = vector.load %arg13[%c0_23, %c0_24] : memref<1x128xf32, #tpu.memory_space<vmem>>, vector<1x128xf32>
    %cst = arith.constant dense<0.000000e+00> : vector<16x128xf32>
    %13 = tpu.matmul %0, %2, %cst {dimension_numbers = #tpu.dot_dimension_numbers<[1], [0], [0], [1], [0, 0, 1, 1], [], []>} : vector<16x128xf32>, vector<128x128xf32>, vector<16x128xf32> -> vector<16x128xf32>
    %14 = vector.broadcast %3 : vector<1x128xf32> to vector<16x128xf32>
    %15 = arith.addf %13, %14 : vector<16x128xf32>
    %cst_25 = arith.constant 0.000000e+00 : f32
    %16 = vector.broadcast %cst_25 : f32 to vector<16x128xf32>
    %17 = arith.maximumf %15, %16 : vector<16x128xf32>
    %cst_26 = arith.constant dense<0.000000e+00> : vector<16x384xf32>
    %18 = tpu.matmul %17, %4, %cst_26 {dimension_numbers = #tpu.dot_dimension_numbers<[1], [0], [0], [1], [0, 0, 1, 1], [], []>} : vector<16x128xf32>, vector<128x384xf32>, vector<16x384xf32> -> vector<16x384xf32>
    %19 = vector.broadcast %5 : vector<1x384xf32> to vector<16x384xf32>
    %20 = arith.addf %18, %19 : vector<16x384xf32>
    %cst_27 = arith.constant dense<0.000000e+00> : vector<16x384xf32>
    %21 = tpu.matmul %1, %6, %cst_27 {dimension_numbers = #tpu.dot_dimension_numbers<[1], [0], [0], [1], [0, 0, 1, 1], [], []>} : vector<16x128xf32>, vector<128x384xf32>, vector<16x384xf32> -> vector<16x384xf32>
    %22 = vector.broadcast %7 : vector<1x384xf32> to vector<16x384xf32>
    %23 = arith.addf %21, %22 : vector<16x384xf32>
    %24 = vector.extract_strided_slice %20 {offsets = [0, 0], sizes = [16, 128], strides = [1, 1]} : vector<16x384xf32> to vector<16x128xf32>
    %25 = vector.extract_strided_slice %23 {offsets = [0, 0], sizes = [16, 128], strides = [1, 1]} : vector<16x384xf32> to vector<16x128xf32>
    %26 = arith.addf %24, %25 : vector<16x128xf32>
    %27 = arith.negf %26 : vector<16x128xf32>
    %28 = math.exp %27 : vector<16x128xf32>
    %cst_28 = arith.constant 1.000000e+00 : f32
    %29 = vector.broadcast %cst_28 : f32 to vector<16x128xf32>
    %30 = arith.addf %29, %28 : vector<16x128xf32>
    %31 = arith.divf %29, %30 : vector<16x128xf32>
    %32 = vector.extract_strided_slice %20 {offsets = [0, 128], sizes = [16, 128], strides = [1, 1]} : vector<16x384xf32> to vector<16x128xf32>
    %33 = vector.extract_strided_slice %23 {offsets = [0, 128], sizes = [16, 128], strides = [1, 1]} : vector<16x384xf32> to vector<16x128xf32>
    %34 = arith.addf %32, %33 : vector<16x128xf32>
    %35 = arith.negf %34 : vector<16x128xf32>
    %36 = math.exp %35 : vector<16x128xf32>
    %cst_29 = arith.constant 1.000000e+00 : f32
    %37 = vector.broadcast %cst_29 : f32 to vector<16x128xf32>
    %38 = arith.addf %37, %36 : vector<16x128xf32>
    %39 = arith.divf %37, %38 : vector<16x128xf32>
    %40 = vector.extract_strided_slice %20 {offsets = [0, 256], sizes = [16, 128], strides = [1, 1]} : vector<16x384xf32> to vector<16x128xf32>
    %41 = vector.extract_strided_slice %23 {offsets = [0, 256], sizes = [16, 128], strides = [1, 1]} : vector<16x384xf32> to vector<16x128xf32>
    %42 = arith.mulf %31, %41 : vector<16x128xf32>
    %43 = arith.addf %40, %42 : vector<16x128xf32>
    %44 = math.tanh %43 : vector<16x128xf32>
    %cst_30 = arith.constant 1.000000e+00 : f32
    %45 = vector.broadcast %cst_30 : f32 to vector<16x128xf32>
    %46 = arith.subf %45, %39 : vector<16x128xf32>
    %47 = arith.mulf %46, %44 : vector<16x128xf32>
    %48 = arith.mulf %39, %1 : vector<16x128xf32>
    %49 = arith.addf %47, %48 : vector<16x128xf32>
    %cst_31 = arith.constant 0.000000e+00 : f32
    %50 = vector.broadcast %cst_31 : f32 to vector<16x128xf32>
    %51 = arith.maximumf %49, %50 : vector<16x128xf32>
    %cst_32 = arith.constant dense<0.000000e+00> : vector<16x128xf32>
    %52 = tpu.matmul %51, %8, %cst_32 {dimension_numbers = #tpu.dot_dimension_numbers<[1], [0], [0], [1], [0, 0, 1, 1], [], []>} : vector<16x128xf32>, vector<128x128xf32>, vector<16x128xf32> -> vector<16x128xf32>
    %53 = vector.broadcast %9 : vector<1x128xf32> to vector<16x128xf32>
    %54 = arith.addf %52, %53 : vector<16x128xf32>
    %cst_33 = arith.constant 0.000000e+00 : f32
    %55 = vector.broadcast %cst_33 : f32 to vector<16x128xf32>
    %56 = arith.maximumf %54, %55 : vector<16x128xf32>
    %cst_34 = arith.constant dense<0.000000e+00> : vector<16x128xf32>
    %57 = tpu.matmul %56, %10, %cst_34 {dimension_numbers = #tpu.dot_dimension_numbers<[1], [0], [0], [1], [0, 0, 1, 1], [], []>} : vector<16x128xf32>, vector<128x128xf32>, vector<16x128xf32> -> vector<16x128xf32>
    %58 = vector.broadcast %11 : vector<1x128xf32> to vector<16x128xf32>
    %59 = arith.addf %57, %58 : vector<16x128xf32>
    %60 = math.exp %59 : vector<16x128xf32>
    %cst_35 = arith.constant dense<0xFF800000> : vector<16xf32>
    %61 = vector.multi_reduction <maximumf>, %60, %cst_35 [1] : vector<16x128xf32> to vector<16xf32>
    %62 = vector.shape_cast %61 : vector<16xf32> to vector<16x1xf32>
    %63 = vector.broadcast %62 : vector<16x1xf32> to vector<16x128xf32>
    %64 = arith.subf %60, %63 : vector<16x128xf32>
    %65 = math.exp %64 : vector<16x128xf32>
    %66 = vector.broadcast %12 : vector<1x128xf32> to vector<16x128xf32>
    %67 = arith.mulf %65, %66 : vector<16x128xf32>
    %cst_36 = arith.constant dense<0.000000e+00> : vector<16xf32>
    %68 = vector.multi_reduction <add>, %67, %cst_36 [1] : vector<16x128xf32> to vector<16xf32>
    %69 = vector.shape_cast %68 : vector<16xf32> to vector<16x1xf32>
    %70 = tpu.reciprocal %69 {approx = true} : vector<16x1xf32> -> vector<16x1xf32>
    %71 = arith.mulf %69, %70 : vector<16x1xf32>
    %cst_37 = arith.constant 2.000000e+00 : f32
    %72 = vector.broadcast %cst_37 : f32 to vector<16x1xf32>
    %73 = arith.subf %72, %71 : vector<16x1xf32>
    %74 = arith.mulf %70, %73 : vector<16x1xf32>
    %75 = vector.broadcast %74 : vector<16x1xf32> to vector<16x128xf32>
    %76 = arith.mulf %67, %75 : vector<16x128xf32>
    %c0_38 = arith.constant 0 : index
    %c0_39 = arith.constant 0 : index
    %77 = vector.load %arg14[%c0_38, %c0_39] : memref<16x128xf32, #tpu.memory_space<vmem>>, vector<16x128xf32>
    tpu.vector_store %arg14[%c0_38, %c0_39], %76 {strides = array<i32>} : memref<16x128xf32, #tpu.memory_space<vmem>>, vector<16x128xf32>,
    %c0_40 = arith.constant 0 : index
    %c0_41 = arith.constant 0 : index
    %78 = vector.load %arg15[%c0_40, %c0_41] : memref<16x128xf32, #tpu.memory_space<vmem>>, vector<16x128xf32>
    tpu.vector_store %arg15[%c0_40, %c0_41], %51 {strides = array<i32>} : memref<16x128xf32, #tpu.memory_space<vmem>>, vector<16x128xf32>,
    return
  }
  func.func @transform_0(%arg0: i32) -> (i32, i32) {
    %c0_i32 = arith.constant 0 : i32
    %c0_i32_0 = arith.constant 0 : i32
    return %arg0, %c0_i32 : i32, i32
  }
  func.func @transform_1(%arg0: i32) -> (i32, i32) {
    %c0_i32 = arith.constant 0 : i32
    %c0_i32_0 = arith.constant 0 : i32
    return %arg0, %c0_i32 : i32, i32
  }
  func.func @transform_2(%arg0: i32) -> (i32, i32) {
    %c0_i32 = arith.constant 0 : i32
    %c0_i32_0 = arith.constant 0 : i32
    %c0_i32_1 = arith.constant 0 : i32
    return %c0_i32, %c0_i32_0 : i32, i32
  }
  func.func @transform_3(%arg0: i32) -> (i32, i32) {
    %c0_i32 = arith.constant 0 : i32
    %c0_i32_0 = arith.constant 0 : i32
    %c0_i32_1 = arith.constant 0 : i32
    return %c0_i32, %c0_i32_0 : i32, i32
  }
  func.func @transform_4(%arg0: i32) -> (i32, i32) {
    %c0_i32 = arith.constant 0 : i32
    %c0_i32_0 = arith.constant 0 : i32
    %c0_i32_1 = arith.constant 0 : i32
    return %c0_i32, %c0_i32_0 : i32, i32
  }
  func.func @transform_5(%arg0: i32) -> (i32, i32) {
    %c0_i32 = arith.constant 0 : i32
    %c0_i32_0 = arith.constant 0 : i32
    %c0_i32_1 = arith.constant 0 : i32
    return %c0_i32, %c0_i32_0 : i32, i32
  }
  func.func @transform_6(%arg0: i32) -> (i32, i32) {
    %c0_i32 = arith.constant 0 : i32
    %c0_i32_0 = arith.constant 0 : i32
    %c0_i32_1 = arith.constant 0 : i32
    return %c0_i32, %c0_i32_0 : i32, i32
  }
  func.func @transform_7(%arg0: i32) -> (i32, i32) {
    %c0_i32 = arith.constant 0 : i32
    %c0_i32_0 = arith.constant 0 : i32
    %c0_i32_1 = arith.constant 0 : i32
    return %c0_i32, %c0_i32_0 : i32, i32
  }
  func.func @transform_8(%arg0: i32) -> (i32, i32) {
    %c0_i32 = arith.constant 0 : i32
    %c0_i32_0 = arith.constant 0 : i32
    %c0_i32_1 = arith.constant 0 : i32
    return %c0_i32, %c0_i32_0 : i32, i32
  }
  func.func @transform_9(%arg0: i32) -> (i32, i32) {
    %c0_i32 = arith.constant 0 : i32
    %c0_i32_0 = arith.constant 0 : i32
    %c0_i32_1 = arith.constant 0 : i32
    return %c0_i32, %c0_i32_0 : i32, i32
  }
  func.func @transform_10(%arg0: i32) -> (i32, i32) {
    %c0_i32 = arith.constant 0 : i32
    %c0_i32_0 = arith.constant 0 : i32
    %c0_i32_1 = arith.constant 0 : i32
    return %c0_i32, %c0_i32_0 : i32, i32
  }
  func.func @transform_11(%arg0: i32) -> (i32, i32) {
    %c0_i32 = arith.constant 0 : i32
    %c0_i32_0 = arith.constant 0 : i32
    %c0_i32_1 = arith.constant 0 : i32
    return %c0_i32, %c0_i32_0 : i32, i32
  }
  func.func @transform_12(%arg0: i32) -> (i32, i32) {
    %c0_i32 = arith.constant 0 : i32
    %c0_i32_0 = arith.constant 0 : i32
    %c0_i32_1 = arith.constant 0 : i32
    return %c0_i32, %c0_i32_0 : i32, i32
  }
  func.func @transform_13(%arg0: i32) -> (i32, i32) {
    %c0_i32 = arith.constant 0 : i32
    %c0_i32_0 = arith.constant 0 : i32
    return %arg0, %c0_i32 : i32, i32
  }
  func.func @transform_14(%arg0: i32) -> (i32, i32) {
    %c0_i32 = arith.constant 0 : i32
    %c0_i32_0 = arith.constant 0 : i32
    return %arg0, %c0_i32 : i32, i32
  }
}

module attributes {stable_mosaic.version = 11 : i64} {
  func.func @_forward_kernel(%arg0: i32, %arg1: memref<16x128xf32, #tpu.memory_space<vmem>>, %arg2: memref<16x128xf32, #tpu.memory_space<vmem>>, %arg3: memref<128x128xf32, #tpu.memory_space<vmem>>, %arg4: memref<1x128xf32, #tpu.memory_space<vmem>>, %arg5: memref<128x384xf32, #tpu.memory_space<vmem>>, %arg6: memref<1x384xf32, #tpu.memory_space<vmem>>, %arg7: memref<128x384xf32, #tpu.memory_space<vmem>>, %arg8: memref<1x384xf32, #tpu.memory_space<vmem>>, %arg9: memref<128x128xf32, #tpu.memory_space<vmem>>, %arg10: memref<1x128xf32, #tpu.memory_space<vmem>>, %arg11: memref<128x128xf32, #tpu.memory_space<vmem>>, %arg12: memref<1x128xf32, #tpu.memory_space<vmem>>, %arg13: memref<1x128xf32, #tpu.memory_space<vmem>>, %arg14: memref<16x128xf32, #tpu.memory_space<vmem>>, %arg15: memref<16x128xf32, #tpu.memory_space<vmem>>) attributes {dimension_semantics = [#tpu.dimension_semantics<parallel>], iteration_bounds = array<i64: 1>, scalar_prefetch = 0 : i64, scratch_operands = 0 : i64, tpu.core_type = #tpu.core_type<tc>, window_params = [{transform_indices = @transform_0, window_bounds = array<i64: 16, 128>}, {transform_indices = @transform_1, window_bounds = array<i64: 16, 128>}, {pipeline_mode = #tpu.pipeline_mode<synchronous>, transform_indices = @transform_2, window_bounds = array<i64: 128, 128>}, {pipeline_mode = #tpu.pipeline_mode<synchronous>, transform_indices = @transform_3, window_bounds = array<i64: 1, 128>}, {pipeline_mode = #tpu.pipeline_mode<synchronous>, transform_indices = @transform_4, window_bounds = array<i64: 128, 384>}, {pipeline_mode = #tpu.pipeline_mode<synchronous>, transform_indices = @transform_5, window_bounds = array<i64: 1, 384>}, {pipeline_mode = #tpu.pipeline_mode<synchronous>, transform_indices = @transform_6, window_bounds = array<i64: 128, 384>}, {pipeline_mode = #tpu.pipeline_mode<synchronous>, transform_indices = @transform_7, window_bounds = array<i64: 1, 384>}, {pipeline_mode = #tpu.pipeline_mode<synchronous>, transform_indices = @transform_8, window_bounds = array<i64: 128, 128>}, {pipeline_mode = #tpu.pipeline_mode<synchronous>, transform_indices = @transform_9, window_bounds = array<i64: 1, 128>}, {pipeline_mode = #tpu.pipeline_mode<synchronous>, transform_indices = @transform_10, window_bounds = array<i64: 128, 128>}, {pipeline_mode = #tpu.pipeline_mode<synchronous>, transform_indices = @transform_11, window_bounds = array<i64: 1, 128>}, {pipeline_mode = #tpu.pipeline_mode<synchronous>, transform_indices = @transform_12, window_bounds = array<i64: 1, 128>}, {transform_indices = @transform_13, window_bounds = array<i64: 16, 128>}, {transform_indices = @transform_14, window_bounds = array<i64: 16, 128>}]} {
    %c0 = arith.constant 0 : index
    %c0_0 = arith.constant 0 : index
    %0 = vector.load %arg1[%c0, %c0_0] : memref<16x128xf32, #tpu.memory_space<vmem>>, vector<16x128xf32>
    %c0_1 = arith.constant 0 : index
    %c0_2 = arith.constant 0 : index
    %1 = vector.load %arg2[%c0_1, %c0_2] : memref<16x128xf32, #tpu.memory_space<vmem>>, vector<16x128xf32>
    %c0_3 = arith.constant 0 : index
    %c0_4 = arith.constant 0 : index
    %2 = vector.load %arg3[%c0_3, %c0_4] : memref<128x128xf32, #tpu.memory_space<vmem>>, vector<128x128xf32>
    %c0_5 = arith.constant 0 : index
    %c0_6 = arith.constant 0 : index
    %3 = vector.load %arg4[%c0_5, %c0_6] : memref<1x128xf32, #tpu.memory_space<vmem>>, vector<1x128xf32>
    %c0_7 = arith.constant 0 : index
    %c0_8 = arith.constant 0 : index
    %4 = vector.load %arg5[%c0_7, %c0_8] : memref<128x384xf32, #tpu.memory_space<vmem>>, vector<128x384xf32>
    %c0_9 = arith.constant 0 : index
    %c0_10 = arith.constant 0 : index
    %5 = vector.load %arg6[%c0_9, %c0_10] : memref<1x384xf32, #tpu.memory_space<vmem>>, vector<1x384xf32>
    %c0_11 = arith.constant 0 : index
    %c0_12 = arith.constant 0 : index
    %6 = vector.load %arg7[%c0_11, %c0_12] : memref<128x384xf32, #tpu.memory_space<vmem>>, vector<128x384xf32>
    %c0_13 = arith.constant 0 : index
    %c0_14 = arith.constant 0 : index
    %7 = vector.load %arg8[%c0_13, %c0_14] : memref<1x384xf32, #tpu.memory_space<vmem>>, vector<1x384xf32>
    %c0_15 = arith.constant 0 : index
    %c0_16 = arith.constant 0 : index
    %8 = vector.load %arg9[%c0_15, %c0_16] : memref<128x128xf32, #tpu.memory_space<vmem>>, vector<128x128xf32>
    %c0_17 = arith.constant 0 : index
    %c0_18 = arith.constant 0 : index
    %9 = vector.load %arg10[%c0_17, %c0_18] : memref<1x128xf32, #tpu.memory_space<vmem>>, vector<1x128xf32>
    %c0_19 = arith.constant 0 : index
    %c0_20 = arith.constant 0 : index
    %10 = vector.load %arg11[%c0_19, %c0_20] : memref<128x128xf32, #tpu.memory_space<vmem>>, vector<128x128xf32>
    %c0_21 = arith.constant 0 : index
    %c0_22 = arith.constant 0 : index
    %11 = vector.load %arg12[%c0_21, %c0_22] : memref<1x128xf32, #tpu.memory_space<vmem>>, vector<1x128xf32>
    %c0_23 = arith.constant 0 : index
    %c0_24 = arith.constant 0 : index
    %12 = vector.load %arg13[%c0_23, %c0_24] : memref<1x128xf32, #tpu.memory_space<vmem>>, vector<1x128xf32>
    %cst = arith.constant dense<0.000000e+00> : vector<16x128xf32>
    %13 = tpu.matmul %0, %2, %cst {dimension_numbers = #tpu.dot_dimension_numbers<[1], [0], [0], [1], [0, 0, 1, 1], [], []>} : vector<16x128xf32>, vector<128x128xf32>, vector<16x128xf32> -> vector<16x128xf32>
    %14 = vector.broadcast %3 : vector<1x128xf32> to vector<16x128xf32>
    %15 = arith.addf %13, %14 : vector<16x128xf32>
    %cst_25 = arith.constant 0.000000e+00 : f32
    %16 = vector.broadcast %cst_25 : f32 to vector<16x128xf32>
    %17 = arith.maximumf %15, %16 : vector<16x128xf32>
    %cst_26 = arith.constant dense<0.000000e+00> : vector<16x384xf32>
    %18 = tpu.matmul %17, %4, %cst_26 {dimension_numbers = #tpu.dot_dimension_numbers<[1], [0], [0], [1], [0, 0, 1, 1], [], []>} : vector<16x128xf32>, vector<128x384xf32>, vector<16x384xf32> -> vector<16x384xf32>
    %19 = vector.broadcast %5 : vector<1x384xf32> to vector<16x384xf32>
    %20 = arith.addf %18, %19 : vector<16x384xf32>
    %cst_27 = arith.constant dense<0.000000e+00> : vector<16x384xf32>
    %21 = tpu.matmul %1, %6, %cst_27 {dimension_numbers = #tpu.dot_dimension_numbers<[1], [0], [0], [1], [0, 0, 1, 1], [], []>} : vector<16x128xf32>, vector<128x384xf32>, vector<16x384xf32> -> vector<16x384xf32>
    %22 = vector.broadcast %7 : vector<1x384xf32> to vector<16x384xf32>
    %23 = arith.addf %21, %22 : vector<16x384xf32>
    %24 = vector.extract_strided_slice %20 {offsets = [0, 0], sizes = [16, 128], strides = [1, 1]} : vector<16x384xf32> to vector<16x128xf32>
    %25 = vector.extract_strided_slice %23 {offsets = [0, 0], sizes = [16, 128], strides = [1, 1]} : vector<16x384xf32> to vector<16x128xf32>
    %26 = arith.addf %24, %25 : vector<16x128xf32>
    %27 = arith.negf %26 : vector<16x128xf32>
    %28 = math.exp %27 : vector<16x128xf32>
    %cst_28 = arith.constant 1.000000e+00 : f32
    %29 = vector.broadcast %cst_28 : f32 to vector<16x128xf32>
    %30 = arith.addf %29, %28 : vector<16x128xf32>
    %31 = arith.divf %29, %30 : vector<16x128xf32>
    %32 = vector.extract_strided_slice %20 {offsets = [0, 128], sizes = [16, 128], strides = [1, 1]} : vector<16x384xf32> to vector<16x128xf32>
    %33 = vector.extract_strided_slice %23 {offsets = [0, 128], sizes = [16, 128], strides = [1, 1]} : vector<16x384xf32> to vector<16x128xf32>
    %34 = arith.addf %32, %33 : vector<16x128xf32>
    %35 = arith.negf %34 : vector<16x128xf32>
    %36 = math.exp %35 : vector<16x128xf32>
    %cst_29 = arith.constant 1.000000e+00 : f32
    %37 = vector.broadcast %cst_29 : f32 to vector<16x128xf32>
    %38 = arith.addf %37, %36 : vector<16x128xf32>
    %39 = arith.divf %37, %38 : vector<16x128xf32>
    %40 = vector.extract_strided_slice %20 {offsets = [0, 256], sizes = [16, 128], strides = [1, 1]} : vector<16x384xf32> to vector<16x128xf32>
    %41 = vector.extract_strided_slice %23 {offsets = [0, 256], sizes = [16, 128], strides = [1, 1]} : vector<16x384xf32> to vector<16x128xf32>
    %42 = arith.mulf %31, %41 : vector<16x128xf32>
    %43 = arith.addf %40, %42 : vector<16x128xf32>
    %44 = math.tanh %43 : vector<16x128xf32>
    %cst_30 = arith.constant 1.000000e+00 : f32
    %45 = vector.broadcast %cst_30 : f32 to vector<16x128xf32>
    %46 = arith.subf %45, %39 : vector<16x128xf32>
    %47 = arith.mulf %46, %44 : vector<16x128xf32>
    %48 = arith.mulf %39, %1 : vector<16x128xf32>
    %49 = arith.addf %47, %48 : vector<16x128xf32>
    %cst_31 = arith.constant 0.000000e+00 : f32
    %50 = vector.broadcast %cst_31 : f32 to vector<16x128xf32>
    %51 = arith.maximumf %49, %50 : vector<16x128xf32>
    %cst_32 = arith.constant dense<0.000000e+00> : vector<16x128xf32>
    %52 = tpu.matmul %51, %8, %cst_32 {dimension_numbers = #tpu.dot_dimension_numbers<[1], [0], [0], [1], [0, 0, 1, 1], [], []>} : vector<16x128xf32>, vector<128x128xf32>, vector<16x128xf32> -> vector<16x128xf32>
    %53 = vector.broadcast %9 : vector<1x128xf32> to vector<16x128xf32>
    %54 = arith.addf %52, %53 : vector<16x128xf32>
    %cst_33 = arith.constant 0.000000e+00 : f32
    %55 = vector.broadcast %cst_33 : f32 to vector<16x128xf32>
    %56 = arith.maximumf %54, %55 : vector<16x128xf32>
    %cst_34 = arith.constant dense<0.000000e+00> : vector<16x128xf32>
    %57 = tpu.matmul %56, %10, %cst_34 {dimension_numbers = #tpu.dot_dimension_numbers<[1], [0], [0], [1], [0, 0, 1, 1], [], []>} : vector<16x128xf32>, vector<128x128xf32>, vector<16x128xf32> -> vector<16x128xf32>
    %58 = vector.broadcast %11 : vector<1x128xf32> to vector<16x128xf32>
    %59 = arith.addf %57, %58 : vector<16x128xf32>
    %60 = math.exp %59 : vector<16x128xf32>
    %cst_35 = arith.constant dense<0xFF800000> : vector<16xf32>
    %61 = vector.multi_reduction <maximumf>, %60, %cst_35 [1] : vector<16x128xf32> to vector<16xf32>
    %62 = vector.shape_cast %61 : vector<16xf32> to vector<16x1xf32>
    %63 = vector.broadcast %62 : vector<16x1xf32> to vector<16x128xf32>
    %64 = arith.subf %60, %63 : vector<16x128xf32>
    %65 = math.exp %64 : vector<16x128xf32>
    %66 = vector.broadcast %12 : vector<1x128xf32> to vector<16x128xf32>
    %67 = arith.mulf %65, %66 : vector<16x128xf32>
    %cst_36 = arith.constant dense<0.000000e+00> : vector<16xf32>
    %68 = vector.multi_reduction <add>, %67, %cst_36 [1] : vector<16x128xf32> to vector<16xf32>
    %69 = vector.shape_cast %68 : vector<16xf32> to vector<16x1xf32>
    %70 = tpu.reciprocal %69 {approx = true} : vector<16x1xf32> -> vector<16x1xf32>
    %71 = arith.mulf %69, %70 : vector<16x1xf32>
    %cst_37 = arith.constant 2.000000e+00 : f32
    %72 = vector.broadcast %cst_37 : f32 to vector<16x1xf32>
    %73 = arith.subf %72, %71 : vector<16x1xf32>
    %74 = arith.mulf %70, %73 : vector<16x1xf32>
    %75 = vector.broadcast %74 : vector<16x1xf32> to vector<16x128xf32>
    %76 = arith.mulf %67, %75 : vector<16x128xf32>
    %c0_38 = arith.constant 0 : index
    %c0_39 = arith.constant 0 : index
    %77 = vector.load %arg14[%c0_38, %c0_39] : memref<16x128xf32, #tpu.memory_space<vmem>>, vector<16x128xf32>
    tpu.vector_store %arg14[%c0_38, %c0_39], %76 {strides = array<i32>} : memref<16x128xf32, #tpu.memory_space<vmem>>, vector<16x128xf32>,
    %c0_40 = arith.constant 0 : index
    %c0_41 = arith.constant 0 : index
    %78 = vector.load %arg15[%c0_40, %c0_41] : memref<16x128xf32, #tpu.memory_space<vmem>>, vector<16x128xf32>
    tpu.vector_store %arg15[%c0_40, %c0_41], %51 {strides = array<i32>} : memref<16x128xf32, #tpu.memory_space<vmem>>, vector<16x128xf32>,
    return
  }
  func.func @transform_0(%arg0: i32) -> (i32, i32) {
    %c0_i32 = arith.constant 0 : i32
    %c0_i32_0 = arith.constant 0 : i32
    return %arg0, %c0_i32 : i32, i32
  }
  func.func @transform_1(%arg0: i32) -> (i32, i32) {
    %c0_i32 = arith.constant 0 : i32
    %c0_i32_0 = arith.constant 0 : i32
    return %arg0, %c0_i32 : i32, i32
  }
  func.func @transform_2(%arg0: i32) -> (i32, i32) {
    %c0_i32 = arith.constant 0 : i32
    %c0_i32_0 = arith.constant 0 : i32
    %c0_i32_1 = arith.constant 0 : i32
    return %c0_i32, %c0_i32_0 : i32, i32
  }
  func.func @transform_3(%arg0: i32) -> (i32, i32) {
    %c0_i32 = arith.constant 0 : i32
    %c0_i32_0 = arith.constant 0 : i32
    %c0_i32_1 = arith.constant 0 : i32
    return %c0_i32, %c0_i32_0 : i32, i32
  }
  func.func @transform_4(%arg0: i32) -> (i32, i32) {
    %c0_i32 = arith.constant 0 : i32
    %c0_i32_0 = arith.constant 0 : i32
    %c0_i32_1 = arith.constant 0 : i32
    return %c0_i32, %c0_i32_0 : i32, i32
  }
  func.func @transform_5(%arg0: i32) -> (i32, i32) {
    %c0_i32 = arith.constant 0 : i32
    %c0_i32_0 = arith.constant 0 : i32
    %c0_i32_1 = arith.constant 0 : i32
    return %c0_i32, %c0_i32_0 : i32, i32
  }
  func.func @transform_6(%arg0: i32) -> (i32, i32) {
    %c0_i32 = arith.constant 0 : i32
    %c0_i32_0 = arith.constant 0 : i32
    %c0_i32_1 = arith.constant 0 : i32
    return %c0_i32, %c0_i32_0 : i32, i32
  }
  func.func @transform_7(%arg0: i32) -> (i32, i32) {
    %c0_i32 = arith.constant 0 : i32
    %c0_i32_0 = arith.constant 0 : i32
    %c0_i32_1 = arith.constant 0 : i32
    return %c0_i32, %c0_i32_0 : i32, i32
  }
  func.func @transform_8(%arg0: i32) -> (i32, i32) {
    %c0_i32 = arith.constant 0 : i32
    %c0_i32_0 = arith.constant 0 : i32
    %c0_i32_1 = arith.constant 0 : i32
    return %c0_i32, %c0_i32_0 : i32, i32
  }
  func.func @transform_9(%arg0: i32) -> (i32, i32) {
    %c0_i32 = arith.constant 0 : i32
    %c0_i32_0 = arith.constant 0 : i32
    %c0_i32_1 = arith.constant 0 : i32
    return %c0_i32, %c0_i32_0 : i32, i32
  }
  func.func @transform_10(%arg0: i32) -> (i32, i32) {
    %c0_i32 = arith.constant 0 : i32
    %c0_i32_0 = arith.constant 0 : i32
    %c0_i32_1 = arith.constant 0 : i32
    return %c0_i32, %c0_i32_0 : i32, i32
  }
  func.func @transform_11(%arg0: i32) -> (i32, i32) {
    %c0_i32 = arith.constant 0 : i32
    %c0_i32_0 = arith.constant 0 : i32
    %c0_i32_1 = arith.constant 0 : i32
    return %c0_i32, %c0_i32_0 : i32, i32
  }
  func.func @transform_12(%arg0: i32) -> (i32, i32) {
    %c0_i32 = arith.constant 0 : i32
    %c0_i32_0 = arith.constant 0 : i32
    %c0_i32_1 = arith.constant 0 : i32
    return %c0_i32, %c0_i32_0 : i32, i32
  }
  func.func @transform_13(%arg0: i32) -> (i32, i32) {
    %c0_i32 = arith.constant 0 : i32
    %c0_i32_0 = arith.constant 0 : i32
    return %arg0, %c0_i32 : i32, i32
  }
  func.func @transform_14(%arg0: i32) -> (i32, i32) {
    %c0_i32 = arith.constant 0 : i32
    %c0_i32_0 = arith.constant 0 : i32
    return %arg0, %c0_i32 : i32, i32
  }
}

</mosaic_0001>

<llo_original>
// kernel: tpu_custom_call.1
$region0: #{tpu_custom_call.1}
  #allocation0 [shape = 'u32[]', space=smem, size = 0x4, offset = 0x4, fixed_abs, tag = 'smem constant byte address 0x4 - core index']
  #allocation1 [shape = 'u32[144,128]{1,0:T(1,128)}', space=vmem, size = 0x12000, scoped, tag = 'internal scratch']
  %s0 = inlined_call_operand.vmem [shape: f32[16,128], index: 0, kind: input, shape index: {}]
  %s1 = inlined_call_operand.hbm [shape: f32[16,128], index: 1, kind: input, shape index: {}, may-alias: {1,14}]
  %s2 = inlined_call_operand.hbm [shape: f32[128,128], index: 2, kind: input, shape index: {}]
  %s3 = inlined_call_operand.vmem [shape: f32[1,128], index: 3, kind: input, shape index: {}]
  %s4 = inlined_call_operand.hbm [shape: f32[128,384], index: 4, kind: input, shape index: {}]
  %s5 = inlined_call_operand.vmem [shape: f32[1,384], index: 5, kind: input, shape index: {}]
  %s6 = inlined_call_operand.hbm [shape: f32[128,384], index: 6, kind: input, shape index: {}]
  %s7 = inlined_call_operand.vmem [shape: f32[1,384], index: 7, kind: input, shape index: {}]
  %s8 = inlined_call_operand.hbm [shape: f32[128,128], index: 8, kind: input, shape index: {}]
  %s9 = inlined_call_operand.vmem [shape: f32[1,128], index: 9, kind: input, shape index: {}]
  %s10 = inlined_call_operand.hbm [shape: f32[128,128], index: 10, kind: input, shape index: {}]
  %s11 = inlined_call_operand.vmem [shape: f32[1,128], index: 11, kind: input, shape index: {}]
  %s12 = inlined_call_operand.vmem [shape: f32[1,128], index: 12, kind: input, shape index: {}]
  %s13 = inlined_call_operand.hbm [shape: f32[16,128], index: 13, kind: output, shape index: {0}]
  %s14 = inlined_call_operand.hbm [shape: f32[16,128], index: 14, kind: output, shape index: {1}, may-alias: {1,14}]
  %15 = xla_tuple %s13, %s14
  %s16 = sld [smem:[#allocation0]]
  $region94: #{tpu_custom_call.1} parent=0
    _
  %s18 = ssub.s32 1, %s16
  %s19 = scalar_select 0, %s18, %s16
  $region1: #{tpu_custom_call.1} parent=0
    #allocation2 [shape = 'u8[8192]{0}', space=vmem, size = 0x2000, scoped, tag = 'input window, operand 1, single buffered']
    #allocation3 [shape = 's32[1]{0}', space=sflag, size = 0x4, scoped, tag = 'scoped memory for tpu_custom_call.1']
    #allocation4 [shape = 's32[1]{0}', space=sflag, size = 0x4, scoped, tag = 'scoped memory for tpu_custom_call.1']
    #allocation5 [shape = 'u8[65536]{0}', space=vmem, size = 0x10000, scoped, tag = 'input window, operand 2, single buffered']
    #allocation6 [shape = 's32[1]{0}', space=sflag, size = 0x4, scoped, tag = 'scoped memory for tpu_custom_call.1']
    #allocation7 [shape = 'u8[196608]{0}', space=vmem, size = 0x30000, scoped, tag = 'input window, operand 4, single buffered']
    #allocation8 [shape = 'u8[196608]{0}', space=vmem, size = 0x30000, scoped, tag = 'input window, operand 6, single buffered']
    #allocation9 [shape = 's32[1]{0}', space=sflag, size = 0x4, scoped, tag = 'scoped memory for tpu_custom_call.1']
    #allocation10 [shape = 'u8[65536]{0}', space=vmem, size = 0x10000, scoped, tag = 'input window, operand 8, single buffered']
    #allocation11 [shape = 'u8[65536]{0}', space=vmem, size = 0x10000, scoped, tag = 'input window, operand 10, single buffered']
    #allocation12 [shape = 's32[1]{0}', space=sflag, size = 0x4, scoped, tag = 'scoped memory for tpu_custom_call.1']
    #allocation13 [shape = 'u8[8192]{0}', space=vmem, size = 0x2000, scoped, tag = 'output window, operand 0, single buffered']
    #allocation14 [shape = 'u8[8192]{0}', space=vmem, size = 0x2000, scoped, tag = 'output window, operand 1, single buffered']
    #allocation15 [shape = 's32[1]{0}', space=sflag, size = 0x4, scoped, tag = 'scoped memory for tpu_custom_call.1']
    %20 = vsyncpa [#allocation3], 0
    %21 = vsyncpa [#allocation6], 0
    %22 = vsyncpa [#allocation9], 0
    %23 = vsyncpa [#allocation12], 0
    %24 = vsyncpa [#allocation4], 0
    %25 = vsyncpa [#allocation15], 0
    // Predicated region
    $region2: #{tpu_custom_call.1} parent=1 // pred_check
      _
    $region3: #{tpu_custom_call.1} parent=1 // pred_check_branch
      %27 = sbr.rel (0) target = $region5
    $region4: #{tpu_custom_call.1} parent=1 // pred_region
      _
    $region5: #{tpu_custom_call.1} parent=1 // pred_fallthru
      _
    // Predicated region
    $region6: #{tpu_custom_call.1} parent=1 // pred_check
      _
    $region7: #{tpu_custom_call.1} parent=1 // pred_check_branch
      %29 = sbr.rel (0) target = $region9
    $region8: #{tpu_custom_call.1} parent=1 // pred_region
      %s31 = ssub.s32 256, 256
      %32 = vsyncadd [#allocation3], %s31
      %s33 = sshll.u32 [#allocation2], 4
      %s34 = int_to_ptr.vmem [resolvable:$true] %s33
      %39 = dma.hbm_to_vmem [thread:$0]  %s1, 256, %s34, [#allocation3], 128, 128, 8
    $region9: #{tpu_custom_call.1} parent=1 // pred_fallthru
      _
    // Predicated region
    $region10: #{tpu_custom_call.1} parent=1 // pred_check
      _
    $region11: #{tpu_custom_call.1} parent=1 // pred_check_branch
      %41 = sbr.rel (0) target = $region13
    $region12: #{tpu_custom_call.1} parent=1 // pred_region
      %s43 = ssub.s32 2048, 2048
      %44 = vsyncadd [#allocation6], %s43
      %s45 = sshll.u32 [#allocation5], 4
      %s46 = int_to_ptr.vmem [resolvable:$true] %s45
      %51 = dma.hbm_to_vmem [thread:$0]  %s2, 2048, %s46, [#allocation6], 128, 128, 8
    $region13: #{tpu_custom_call.1} parent=1 // pred_fallthru
      _
    // Predicated region
    $region14: #{tpu_custom_call.1} parent=1 // pred_check
      _
    $region15: #{tpu_custom_call.1} parent=1 // pred_check_branch
      %53 = sbr.rel (0) target = $region17
    $region16: #{tpu_custom_call.1} parent=1 // pred_region
      _
    $region17: #{tpu_custom_call.1} parent=1 // pred_fallthru
      _
    // Predicated region
    $region18: #{tpu_custom_call.1} parent=1 // pred_check
      _
    $region19: #{tpu_custom_call.1} parent=1 // pred_check_branch
      %55 = sbr.rel (0) target = $region21
    $region20: #{tpu_custom_call.1} parent=1 // pred_region
      %s57 = ssub.s32 6144, 6144
      %58 = vsyncadd [#allocation6], %s57
      %s59 = sshll.u32 [#allocation7], 4
      %s60 = int_to_ptr.vmem [resolvable:$true] %s59
      %65 = dma.hbm_to_vmem [thread:$0]  %s4, 6144, %s60, [#allocation6], 384, 384, 24
    $region21: #{tpu_custom_call.1} parent=1 // pred_fallthru
      _
    // Predicated region
    $region22: #{tpu_custom_call.1} parent=1 // pred_check
      _
    $region23: #{tpu_custom_call.1} parent=1 // pred_check_branch
      %67 = sbr.rel (0) target = $region25
    $region24: #{tpu_custom_call.1} parent=1 // pred_region
      _
    $region25: #{tpu_custom_call.1} parent=1 // pred_fallthru
      _
    // Predicated region
    $region26: #{tpu_custom_call.1} parent=1 // pred_check
      _
    $region27: #{tpu_custom_call.1} parent=1 // pred_check_branch
      %69 = sbr.rel (0) target = $region29
    $region28: #{tpu_custom_call.1} parent=1 // pred_region
      %s71 = ssub.s32 6144, 6144
      %72 = vsyncadd [#allocation9], %s71
      %s73 = sshll.u32 [#allocation8], 4
      %s74 = int_to_ptr.vmem [resolvable:$true] %s73
      %79 = dma.hbm_to_vmem [thread:$0]  %s6, 6144, %s74, [#allocation9], 384, 384, 24
    $region29: #{tpu_custom_call.1} parent=1 // pred_fallthru
      _
    // Predicated region
    $region30: #{tpu_custom_call.1} parent=1 // pred_check
      _
    $region31: #{tpu_custom_call.1} parent=1 // pred_check_branch
      %81 = sbr.rel (0) target = $region33
    $region32: #{tpu_custom_call.1} parent=1 // pred_region
      _
    $region33: #{tpu_custom_call.1} parent=1 // pred_fallthru
      _
    // Predicated region
    $region34: #{tpu_custom_call.1} parent=1 // pred_check
      _
    $region35: #{tpu_custom_call.1} parent=1 // pred_check_branch
      %83 = sbr.rel (0) target = $region37
    $region36: #{tpu_custom_call.1} parent=1 // pred_region
      %s85 = ssub.s32 2048, 2048
      %86 = vsyncadd [#allocation9], %s85
      %s87 = sshll.u32 [#allocation10], 4
      %s88 = int_to_ptr.vmem [resolvable:$true] %s87
      %93 = dma.hbm_to_vmem [thread:$0]  %s8, 2048, %s88, [#allocation9], 128, 128, 8
    $region37: #{tpu_custom_call.1} parent=1 // pred_fallthru
      _
    // Predicated region
    $region38: #{tpu_custom_call.1} parent=1 // pred_check
      _
    $region39: #{tpu_custom_call.1} parent=1 // pred_check_branch
      %95 = sbr.rel (0) target = $region41
    $region40: #{tpu_custom_call.1} parent=1 // pred_region
      _
    $region41: #{tpu_custom_call.1} parent=1 // pred_fallthru
      _
    // Predicated region
    $region42: #{tpu_custom_call.1} parent=1 // pred_check
      _
    $region43: #{tpu_custom_call.1} parent=1 // pred_check_branch
      %97 = sbr.rel (0) target = $region45
    $region44: #{tpu_custom_call.1} parent=1 // pred_region
      %s99 = ssub.s32 2048, 2048
      %100 = vsyncadd [#allocation12], %s99
      %s101 = sshll.u32 [#allocation11], 4
      %s102 = int_to_ptr.vmem [resolvable:$true] %s101
      %107 = dma.hbm_to_vmem [thread:$0]  %s10, 2048, %s102, [#allocation12], 128, 128, 8
    $region45: #{tpu_custom_call.1} parent=1 // pred_fallthru
      _
    // Predicated region
    $region46: #{tpu_custom_call.1} parent=1 // pred_check
      _
    $region47: #{tpu_custom_call.1} parent=1 // pred_check_branch
      %109 = sbr.rel (0) target = $region49
    $region48: #{tpu_custom_call.1} parent=1 // pred_region
      _
    $region49: #{tpu_custom_call.1} parent=1 // pred_fallthru
      _
    // Predicated region
    $region50: #{tpu_custom_call.1} parent=1 // pred_check
      _
    $region51: #{tpu_custom_call.1} parent=1 // pred_check_branch
      %111 = sbr.rel (0) target = $region53
    $region52: #{tpu_custom_call.1} parent=1 // pred_region
      _
    $region53: #{tpu_custom_call.1} parent=1 // pred_fallthru
      _
    // Predicated region
    $region54: #{tpu_custom_call.1} parent=1 // pred_check
      _
    $region55: #{tpu_custom_call.1} parent=1 // pred_check_branch
      %113 = sbr.rel (0) target = $region57
    $region56: #{tpu_custom_call.1} parent=1 // pred_region
      %114 = dma.done [#allocation3], 256
    $region57: #{tpu_custom_call.1} parent=1 // pred_fallthru
      _
    // Predicated region
    $region58: #{tpu_custom_call.1} parent=1 // pred_check
      _
    $region59: #{tpu_custom_call.1} parent=1 // pred_check_branch
      %116 = sbr.rel (0) target = $region61
    $region60: #{tpu_custom_call.1} parent=1 // pred_region
      %117 = dma.done [#allocation6], 2048
    $region61: #{tpu_custom_call.1} parent=1 // pred_fallthru
      _
    // Predicated region
    $region62: #{tpu_custom_call.1} parent=1 // pred_check
      _
    $region63: #{tpu_custom_call.1} parent=1 // pred_check_branch
      %119 = sbr.rel (0) target = $region65
    $region64: #{tpu_custom_call.1} parent=1 // pred_region
      %120 = dma.done [#allocation6], 6144
    $region65: #{tpu_custom_call.1} parent=1 // pred_fallthru
      _
    // Predicated region
    $region66: #{tpu_custom_call.1} parent=1 // pred_check
      _
    $region67: #{tpu_custom_call.1} parent=1 // pred_check_branch
      %122 = sbr.rel (0) target = $region69
    $region68: #{tpu_custom_call.1} parent=1 // pred_region
      %123 = dma.done [#allocation9], 6144
    $region69: #{tpu_custom_call.1} parent=1 // pred_fallthru
      _
    // Predicated region
    $region70: #{tpu_custom_call.1} parent=1 // pred_check
      _
    $region71: #{tpu_custom_call.1} parent=1 // pred_check_branch
      %125 = sbr.rel (0) target = $region73
    $region72: #{tpu_custom_call.1} parent=1 // pred_region
      %126 = dma.done [#allocation9], 2048
    $region73: #{tpu_custom_call.1} parent=1 // pred_fallthru
      _
    // Predicated region
    $region74: #{tpu_custom_call.1} parent=1 // pred_check
      _
    $region75: #{tpu_custom_call.1} parent=1 // pred_check_branch
      %128 = sbr.rel (0) target = $region77
    $region76: #{tpu_custom_call.1} parent=1 // pred_region
      %129 = dma.done [#allocation12], 2048
    $region77: #{tpu_custom_call.1} parent=1 // pred_fallthru
      _
    %v130 = vld [vmem:[%s0] sm:$0xff]
    %v131 = vld [vmem:[%s0 + $0x8] sm:$0xff]
    %v132 = vld [vmem:[#allocation2] sm:$0xff]
    %v133 = vld [vmem:[#allocation2 + $0x8] sm:$0xff]
    %v134 = vld [vmem:[#allocation5] sm:$0xff]
    %v135 = vld [vmem:[#allocation5 + $0x8] sm:$0xff]
    %v136 = vld [vmem:[#allocation5 + $0x10] sm:$0xff]
    %v137 = vld [vmem:[#allocation5 + $0x18] sm:$0xff]
    %v138 = vld [vmem:[#allocation5 + $0x20] sm:$0xff]
    %v139 = vld [vmem:[#allocation5 + $0x28] sm:$0xff]
    %v140 = vld [vmem:[#allocation5 + $0x30] sm:$0xff]
    %v141 = vld [vmem:[#allocation5 + $0x38] sm:$0xff]
    %v142 = vld [vmem:[#allocation5 + $0x40] sm:$0xff]
    %v143 = vld [vmem:[#allocation5 + $0x48] sm:$0xff]
    %v144 = vld [vmem:[#allocation5 + $0x50] sm:$0xff]
    %v145 = vld [vmem:[#allocation5 + $0x58] sm:$0xff]
    %v146 = vld [vmem:[#allocation5 + $0x60] sm:$0xff]
    %v147 = vld [vmem:[#allocation5 + $0x68] sm:$0xff]
    %v148 = vld [vmem:[#allocation5 + $0x70] sm:$0xff]
    %v149 = vld [vmem:[#allocation5 + $0x78] sm:$0xff]
    %v150 = vld [vmem:[%s3] sm:$0x1]
    %v151 = vld [vmem:[#allocation7] sm:$0xff]
    %v152 = vld [vmem:[#allocation7 + $0x8] sm:$0xff]
    %v153 = vld [vmem:[#allocation7 + $0x10] sm:$0xff]
    %v154 = vld [vmem:[#allocation7 + $0x18] sm:$0xff]
    %v155 = vld [vmem:[#allocation7 + $0x20] sm:$0xff]
    %v156 = vld [vmem:[#allocation7 + $0x28] sm:$0xff]
    %v157 = vld [vmem:[#allocation7 + $0x30] sm:$0xff]
    %v158 = vld [vmem:[#allocation7 + $0x38] sm:$0xff]
    %v159 = vld [vmem:[#allocation7 + $0x40] sm:$0xff]
    %v160 = vld [vmem:[#allocation7 + $0x48] sm:$0xff]
    %v161 = vld [vmem:[#allocation7 + $0x50] sm:$0xff]
    %v162 = vld [vmem:[#allocation7 + $0x58] sm:$0xff]
    %v163 = vld [vmem:[#allocation7 + $0x60] sm:$0xff]
    %v164 = vld [vmem:[#allocation7 + $0x68] sm:$0xff]
    %v165 = vld [vmem:[#allocation7 + $0x70] sm:$0xff]
    %v166 = vld [vmem:[#allocation7 + $0x78] sm:$0xff]
    %v167 = vld [vmem:[#allocation7 + $0x80] sm:$0xff]
    %v168 = vld [vmem:[#allocation7 + $0x88] sm:$0xff]
    %v169 = vld [vmem:[#allocation7 + $0x90] sm:$0xff]
    %v170 = vld [vmem:[#allocation7 + $0x98] sm:$0xff]
    %v171 = vld [vmem:[#allocation7 + $0xa0] sm:$0xff]
    %v172 = vld [vmem:[#allocation7 + $0xa8] sm:$0xff]
    %v173 = vld [vmem:[#allocation7 + $0xb0] sm:$0xff]
    %v174 = vld [vmem:[#allocation7 + $0xb8] sm:$0xff]
    %v175 = vld [vmem:[#allocation7 + $0xc0] sm:$0xff]
    %v176 = vld [vmem:[#allocation7 + $0xc8] sm:$0xff]
    %v177 = vld [vmem:[#allocation7 + $0xd0] sm:$0xff]
    %v178 = vld [vmem:[#allocation7 + $0xd8] sm:$0xff]
    %v179 = vld [vmem:[#allocation7 + $0xe0] sm:$0xff]
    %v180 = vld [vmem:[#allocation7 + $0xe8] sm:$0xff]
    %v181 = vld [vmem:[#allocation7 + $0xf0] sm:$0xff]
    %v182 = vld [vmem:[#allocation7 + $0xf8] sm:$0xff]
    %v183 = vld [vmem:[#allocation7 + $0x100] sm:$0xff]
    %v184 = vld [vmem:[#allocation7 + $0x108] sm:$0xff]
    %v185 = vld [vmem:[#allocation7 + $0x110] sm:$0xff]
    %v186 = vld [vmem:[#allocation7 + $0x118] sm:$0xff]
    %v187 = vld [vmem:[#allocation7 + $0x120] sm:$0xff]
    %v188 = vld [vmem:[#allocation7 + $0x128] sm:$0xff]
    %v189 = vld [vmem:[#allocation7 + $0x130] sm:$0xff]
    %v190 = vld [vmem:[#allocation7 + $0x138] sm:$0xff]
    %v191 = vld [vmem:[#allocation7 + $0x140] sm:$0xff]
    %v192 = vld [vmem:[#allocation7 + $0x148] sm:$0xff]
    %v193 = vld [vmem:[#allocation7 + $0x150] sm:$0xff]
    %v194 = vld [vmem:[#allocation7 + $0x158] sm:$0xff]
    %v195 = vld [vmem:[#allocation7 + $0x160] sm:$0xff]
    %v196 = vld [vmem:[#allocation7 + $0x168] sm:$0xff]
    %v197 = vld [vmem:[#allocation7 + $0x170] sm:$0xff]
    %v198 = vld [vmem:[#allocation7 + $0x178] sm:$0xff]
    %v199 = vld [vmem:[%s5] sm:$0x7]
    %v200 = vld [vmem:[#allocation8] sm:$0xff]
    %v201 = vld [vmem:[#allocation8 + $0x8] sm:$0xff]
    %v202 = vld [vmem:[#allocation8 + $0x10] sm:$0xff]
    %v203 = vld [vmem:[#allocation8 + $0x18] sm:$0xff]
    %v204 = vld [vmem:[#allocation8 + $0x20] sm:$0xff]
    %v205 = vld [vmem:[#allocation8 + $0x28] sm:$0xff]
    %v206 = vld [vmem:[#allocation8 + $0x30] sm:$0xff]
    %v207 = vld [vmem:[#allocation8 + $0x38] sm:$0xff]
    %v208 = vld [vmem:[#allocation8 + $0x40] sm:$0xff]
    %v209 = vld [vmem:[#allocation8 + $0x48] sm:$0xff]
    %v210 = vld [vmem:[#allocation8 + $0x50] sm:$0xff]
    %v211 = vld [vmem:[#allocation8 + $0x58] sm:$0xff]
    %v212 = vld [vmem:[#allocation8 + $0x60] sm:$0xff]
    %v213 = vld [vmem:[#allocation8 + $0x68] sm:$0xff]
    %v214 = vld [vmem:[#allocation8 + $0x70] sm:$0xff]
    %v215 = vld [vmem:[#allocation8 + $0x78] sm:$0xff]
    %v216 = vld [vmem:[#allocation8 + $0x80] sm:$0xff]
    %v217 = vld [vmem:[#allocation8 + $0x88] sm:$0xff]
    %v218 = vld [vmem:[#allocation8 + $0x90] sm:$0xff]
    %v219 = vld [vmem:[#allocation8 + $0x98] sm:$0xff]
    %v220 = vld [vmem:[#allocation8 + $0xa0] sm:$0xff]
    %v221 = vld [vmem:[#allocation8 + $0xa8] sm:$0xff]
    %v222 = vld [vmem:[#allocation8 + $0xb0] sm:$0xff]
    %v223 = vld [vmem:[#allocation8 + $0xb8] sm:$0xff]
    %v224 = vld [vmem:[#allocation8 + $0xc0] sm:$0xff]
    %v225 = vld [vmem:[#allocation8 + $0xc8] sm:$0xff]
    %v226 = vld [vmem:[#allocation8 + $0xd0] sm:$0xff]
    %v227 = vld [vmem:[#allocation8 + $0xd8] sm:$0xff]
    %v228 = vld [vmem:[#allocation8 + $0xe0] sm:$0xff]
    %v229 = vld [vmem:[#allocation8 + $0xe8] sm:$0xff]
    %v230 = vld [vmem:[#allocation8 + $0xf0] sm:$0xff]
    %v231 = vld [vmem:[#allocation8 + $0xf8] sm:$0xff]
    %v232 = vld [vmem:[#allocation8 + $0x100] sm:$0xff]
    %v233 = vld [vmem:[#allocation8 + $0x108] sm:$0xff]
    %v234 = vld [vmem:[#allocation8 + $0x110] sm:$0xff]
    %v235 = vld [vmem:[#allocation8 + $0x118] sm:$0xff]
    %v236 = vld [vmem:[#allocation8 + $0x120] sm:$0xff]
    %v237 = vld [vmem:[#allocation8 + $0x128] sm:$0xff]
    %v238 = vld [vmem:[#allocation8 + $0x130] sm:$0xff]
    %v239 = vld [vmem:[#allocation8 + $0x138] sm:$0xff]
    %v240 = vld [vmem:[#allocation8 + $0x140] sm:$0xff]
    %v241 = vld [vmem:[#allocation8 + $0x148] sm:$0xff]
    %v242 = vld [vmem:[#allocation8 + $0x150] sm:$0xff]
    %v243 = vld [vmem:[#allocation8 + $0x158] sm:$0xff]
    %v244 = vld [vmem:[#allocation8 + $0x160] sm:$0xff]
    %v245 = vld [vmem:[#allocation8 + $0x168] sm:$0xff]
    %v246 = vld [vmem:[#allocation8 + $0x170] sm:$0xff]
    %v247 = vld [vmem:[#allocation8 + $0x178] sm:$0xff]
    %v248 = vld [vmem:[%s7] sm:$0x7]
    %v249 = vld [vmem:[#allocation10] sm:$0xff]
    %v250 = vld [vmem:[#allocation10 + $0x8] sm:$0xff]
    %v251 = vld [vmem:[#allocation10 + $0x10] sm:$0xff]
    %v252 = vld [vmem:[#allocation10 + $0x18] sm:$0xff]
    %v253 = vld [vmem:[#allocation10 + $0x20] sm:$0xff]
    %v254 = vld [vmem:[#allocation10 + $0x28] sm:$0xff]
    %v255 = vld [vmem:[#allocation10 + $0x30] sm:$0xff]
    %v256 = vld [vmem:[#allocation10 + $0x38] sm:$0xff]
    %v257 = vld [vmem:[#allocation10 + $0x40] sm:$0xff]
    %v258 = vld [vmem:[#allocation10 + $0x48] sm:$0xff]
    %v259 = vld [vmem:[#allocation10 + $0x50] sm:$0xff]
    %v260 = vld [vmem:[#allocation10 + $0x58] sm:$0xff]
    %v261 = vld [vmem:[#allocation10 + $0x60] sm:$0xff]
    %v262 = vld [vmem:[#allocation10 + $0x68] sm:$0xff]
    %v263 = vld [vmem:[#allocation10 + $0x70] sm:$0xff]
    %v264 = vld [vmem:[#allocation10 + $0x78] sm:$0xff]
    %v265 = vld [vmem:[%s9] sm:$0x1]
    %v266 = vld [vmem:[#allocation11] sm:$0xff]
    %v267 = vld [vmem:[#allocation11 + $0x8] sm:$0xff]
    %v268 = vld [vmem:[#allocation11 + $0x10] sm:$0xff]
    %v269 = vld [vmem:[#allocation11 + $0x18] sm:$0xff]
    %v270 = vld [vmem:[#allocation11 + $0x20] sm:$0xff]
    %v271 = vld [vmem:[#allocation11 + $0x28] sm:$0xff]
    %v272 = vld [vmem:[#allocation11 + $0x30] sm:$0xff]
    %v273 = vld [vmem:[#allocation11 + $0x38] sm:$0xff]
    %v274 = vld [vmem:[#allocation11 + $0x40] sm:$0xff]
    %v275 = vld [vmem:[#allocation11 + $0x48] sm:$0xff]
    %v276 = vld [vmem:[#allocation11 + $0x50] sm:$0xff]
    %v277 = vld [vmem:[#allocation11 + $0x58] sm:$0xff]
    %v278 = vld [vmem:[#allocation11 + $0x60] sm:$0xff]
    %v279 = vld [vmem:[#allocation11 + $0x68] sm:$0xff]
    %v280 = vld [vmem:[#allocation11 + $0x70] sm:$0xff]
    %v281 = vld [vmem:[#allocation11 + $0x78] sm:$0xff]
    %v282 = vld [vmem:[%s11] sm:$0x1]
    %v283 = vld [vmem:[%s12] sm:$0x1]
    %v285 = vlaneseq
    %v286 = vshrl.u32 %v285, 7
    %v287 = vsub.s32 0, %v286
    %v288 = vrot.slane %v150, %v287
    %290 = vmatprep.subr.mxu0 0.0
    %291 = vmatpush1.msra.mxu0 %v134
    %292 = vmatprep.subr.mxu0 0.0
    %293 = vmatpush1.msra.mxu0 %v135
    %294 = vmatprep.subr.mxu0 0.0
    %295 = vmatpush1.msra.mxu0 %v136
    %296 = vmatprep.subr.mxu0 0.0
    %297 = vmatpush1.msra.mxu0 %v137
    %298 = vmatprep.subr.mxu0 0.0
    %299 = vmatpush1.msra.mxu0 %v138
    %300 = vmatprep.subr.mxu0 0.0
    %301 = vmatpush1.msra.mxu0 %v139
    %302 = vmatprep.subr.mxu0 0.0
    %303 = vmatpush1.msra.mxu0 %v140
    %304 = vmatprep.subr.mxu0 0.0
    %305 = vmatpush1.msra.mxu0 %v141
    %306 = vmatprep.subr.mxu0 0.0
    %307 = vmatpush1.msra.mxu0 %v142
    %308 = vmatprep.subr.mxu0 0.0
    %309 = vmatpush1.msra.mxu0 %v143
    %310 = vmatprep.subr.mxu0 0.0
    %311 = vmatpush1.msra.mxu0 %v144
    %312 = vmatprep.subr.mxu0 0.0
    %313 = vmatpush1.msra.mxu0 %v145
    %314 = vmatprep.subr.mxu0 0.0
    %315 = vmatpush1.msra.mxu0 %v146
    %316 = vmatprep.subr.mxu0 0.0
    %317 = vmatpush1.msra.mxu0 %v147
    %318 = vmatprep.subr.mxu0 0.0
    %319 = vmatpush1.msra.mxu0 %v148
    %320 = vmatprep.subr.mxu0 0.0
    %321 = vmatpush1.msra.mxu0 %v149
    %322 = vmatprep.subr.mxu0 0.0
    %323 = vmatpush1.msra.mxu0 0.0
    %324 = vmatprep.subr.mxu0 0.0
    %325 = vmatpush1.msra.mxu0 0.0
    %326 = vmatprep.subr.mxu0 0.0
    %327 = vmatpush1.msra.mxu0 0.0
    %328 = vmatprep.subr.mxu0 0.0
    %329 = vmatpush1.msra.mxu0 0.0
    %330 = vmatprep.subr.mxu0 0.0
    %331 = vmatpush1.msra.mxu0 0.0
    %332 = vmatprep.subr.mxu0 0.0
    %333 = vmatpush1.msra.mxu0 0.0
    %334 = vmatprep.subr.mxu0 0.0
    %335 = vmatpush1.msra.mxu0 0.0
    %336 = vmatprep.subr.mxu0 0.0
    %337 = vmatpush1.msra.mxu0 0.0
    %338 = vmatprep.subr.mxu0 0.0
    %339 = vmatpush1.msra.mxu0 0.0
    %340 = vmatprep.subr.mxu0 0.0
    %341 = vmatpush1.msra.mxu0 0.0
    %342 = vmatprep.subr.mxu0 0.0
    %343 = vmatpush1.msra.mxu0 0.0
    %344 = vmatprep.subr.mxu0 0.0
    %345 = vmatpush1.msra.mxu0 0.0
    %346 = vmatprep.subr.mxu0 0.0
    %347 = vmatpush1.msra.mxu0 0.0
    %348 = vmatprep.subr.mxu0 0.0
    %349 = vmatpush1.msra.mxu0 0.0
    %350 = vmatprep.subr.mxu0 0.0
    %351 = vmatpush1.msra.mxu0 0.0
    %352 = vmatprep.subr.mxu0 0.0
    %353 = vmatpush1.msra.mxu0 0.0
    %354 = vmatprep.mubr.f32.mxu0 0.0
    %355 = vmatmul.mubr.f32.gmra.mrb[0].mxu0 %v130
    %v356 = vpop.f32.mrb[0].mxu0
    %v357 = vadd.f32 %v288, %v356
    %v358 = vpop.f32.mrb[0].mxu0
    %359 = vmatprep.mubr.f32.mxu0 0.0
    %360 = vmatmul.mubr.f32.gmra.mrb[0].mxu0 %v131
    %v361 = vpop.f32.mrb[0].mxu0
    %v362 = vadd.f32 %v288, %v361
    %v363 = vpop.f32.mrb[0].mxu0
    %364 = vdwg.mxu0
    %v365 = vmax.f32 %v357, 0.0
    %v366 = vmax.f32 %v362, 0.0
    %v368 = vlaneseq
    %v369 = vshrl.u32 %v368, 7
    %v370 = vsub.s32 0, %v369
    %v371 = vrot.slane %v199, %v370
    %v372 = vlaneseq
    %v373 = vshrl.u32 %v372, 7
    %v374 = vsub.s32 1, %v373
    %v375 = vrot.slane %v199, %v374
    %v376 = vlaneseq
    %v377 = vshrl.u32 %v376, 7
    %v378 = vsub.s32 2, %v377
    %v379 = vrot.slane %v199, %v378
    %383 = vmatprep.subr.mxu0 %v152
    %384 = vmatpush1.msra.mxu0 %v151
    %385 = vmatprep.subr.mxu0 %v155
    %386 = vmatpush1.msra.mxu0 %v154
    %387 = vmatprep.subr.mxu0 %v158
    %388 = vmatpush1.msra.mxu0 %v157
    %389 = vmatprep.subr.mxu0 %v161
    %390 = vmatpush1.msra.mxu0 %v160
    %391 = vmatprep.subr.mxu0 %v164
    %392 = vmatpush1.msra.mxu0 %v163
    %393 = vmatprep.subr.mxu0 %v167
    %394 = vmatpush1.msra.mxu0 %v166
    %395 = vmatprep.subr.mxu0 %v170
    %396 = vmatpush1.msra.mxu0 %v169
    %397 = vmatprep.subr.mxu0 %v173
    %398 = vmatpush1.msra.mxu0 %v172
    %399 = vmatprep.subr.mxu0 %v176
    %400 = vmatpush1.msra.mxu0 %v175
    %401 = vmatprep.subr.mxu0 %v179
    %402 = vmatpush1.msra.mxu0 %v178
    %403 = vmatprep.subr.mxu0 %v182
    %404 = vmatpush1.msra.mxu0 %v181
    %405 = vmatprep.subr.mxu0 %v185
    %406 = vmatpush1.msra.mxu0 %v184
    %407 = vmatprep.subr.mxu0 %v188
    %408 = vmatpush1.msra.mxu0 %v187
    %409 = vmatprep.subr.mxu0 %v191
    %410 = vmatpush1.msra.mxu0 %v190
    %411 = vmatprep.subr.mxu0 %v194
    %412 = vmatpush1.msra.mxu0 %v193
    %413 = vmatprep.subr.mxu0 %v197
    %414 = vmatpush1.msra.mxu0 %v196
    %415 = vmatprep.subr.mxu0 0.0
    %416 = vmatpush1.msra.mxu0 0.0
    %417 = vmatprep.subr.mxu0 0.0
    %418 = vmatpush1.msra.mxu0 0.0
    %419 = vmatprep.subr.mxu0 0.0
    %420 = vmatpush1.msra.mxu0 0.0
    %421 = vmatprep.subr.mxu0 0.0
    %422 = vmatpush1.msra.mxu0 0.0
    %423 = vmatprep.subr.mxu0 0.0
    %424 = vmatpush1.msra.mxu0 0.0
    %425 = vmatprep.subr.mxu0 0.0
    %426 = vmatpush1.msra.mxu0 0.0
    %427 = vmatprep.subr.mxu0 0.0
    %428 = vmatpush1.msra.mxu0 0.0
    %429 = vmatprep.subr.mxu0 0.0
    %430 = vmatpush1.msra.mxu0 0.0
    %431 = vmatprep.subr.mxu0 0.0
    %432 = vmatpush1.msra.mxu0 0.0
    %433 = vmatprep.subr.mxu0 0.0
    %434 = vmatpush1.msra.mxu0 0.0
    %435 = vmatprep.subr.mxu0 0.0
    %436 = vmatpush1.msra.mxu0 0.0
    %437 = vmatprep.subr.mxu0 0.0
    %438 = vmatpush1.msra.mxu0 0.0
    %439 = vmatprep.subr.mxu0 0.0
    %440 = vmatpush1.msra.mxu0 0.0
    %441 = vmatprep.subr.mxu0 0.0
    %442 = vmatpush1.msra.mxu0 0.0
    %443 = vmatprep.subr.mxu0 0.0
    %444 = vmatpush1.msra.mxu0 0.0
    %445 = vmatprep.subr.mxu0 0.0
    %446 = vmatpush1.msra.mxu0 0.0
    %447 = vmatprep.mubr.f32.mxu0 0.0
    %448 = vmatmul.mubr.f32.gmra.mrb[0].mxu0 %v365
    %v449 = vpop.f32.mrb[0].mxu0
    %v450 = vadd.f32 %v371, %v449
    %v451 = vpop.f32.mrb[0].mxu0
    %v452 = vadd.f32 %v375, %v451
    %453 = vmatprep.mubr.f32.mxu0 0.0
    %454 = vmatmul.mubr.f32.gmra.mrb[0].mxu0 %v366
    %v455 = vpop.f32.mrb[0].mxu0
    %v456 = vadd.f32 %v371, %v455
    %v457 = vpop.f32.mrb[0].mxu0
    %v458 = vadd.f32 %v375, %v457
    %459 = vdwg.mxu0
    %460 = vmatprep.subr.mxu0 0.0
    %461 = vmatpush1.msra.mxu0 %v153
    %462 = vmatprep.subr.mxu0 0.0
    %463 = vmatpush1.msra.mxu0 %v156
    %464 = vmatprep.subr.mxu0 0.0
    %465 = vmatpush1.msra.mxu0 %v159
    %466 = vmatprep.subr.mxu0 0.0
    %467 = vmatpush1.msra.mxu0 %v162
    %468 = vmatprep.subr.mxu0 0.0
    %469 = vmatpush1.msra.mxu0 %v165
    %470 = vmatprep.subr.mxu0 0.0
    %471 = vmatpush1.msra.mxu0 %v168
    %472 = vmatprep.subr.mxu0 0.0
    %473 = vmatpush1.msra.mxu0 %v171
    %474 = vmatprep.subr.mxu0 0.0
    %475 = vmatpush1.msra.mxu0 %v174
    %476 = vmatprep.subr.mxu0 0.0
    %477 = vmatpush1.msra.mxu0 %v177
    %478 = vmatprep.subr.mxu0 0.0
    %479 = vmatpush1.msra.mxu0 %v180
    %480 = vmatprep.subr.mxu0 0.0
    %481 = vmatpush1.msra.mxu0 %v183
    %482 = vmatprep.subr.mxu0 0.0
    %483 = vmatpush1.msra.mxu0 %v186
    %484 = vmatprep.subr.mxu0 0.0
    %485 = vmatpush1.msra.mxu0 %v189
    %486 = vmatprep.subr.mxu0 0.0
    %487 = vmatpush1.msra.mxu0 %v192
    %488 = vmatprep.subr.mxu0 0.0
    %489 = vmatpush1.msra.mxu0 %v195
    %490 = vmatprep.subr.mxu0 0.0
    %491 = vmatpush1.msra.mxu0 %v198
    %492 = vmatprep.subr.mxu0 0.0
    %493 = vmatpush1.msra.mxu0 0.0
    %494 = vmatprep.subr.mxu0 0.0
    %495 = vmatpush1.msra.mxu0 0.0
    %496 = vmatprep.subr.mxu0 0.0
    %497 = vmatpush1.msra.mxu0 0.0
    %498 = vmatprep.subr.mxu0 0.0
    %499 = vmatpush1.msra.mxu0 0.0
    %500 = vmatprep.subr.mxu0 0.0
    %501 = vmatpush1.msra.mxu0 0.0
    %502 = vmatprep.subr.mxu0 0.0
    %503 = vmatpush1.msra.mxu0 0.0
    %504 = vmatprep.subr.mxu0 0.0
    %505 = vmatpush1.msra.mxu0 0.0
    %506 = vmatprep.subr.mxu0 0.0
    %507 = vmatpush1.msra.mxu0 0.0
    %508 = vmatprep.subr.mxu0 0.0
    %509 = vmatpush1.msra.mxu0 0.0
    %510 = vmatprep.subr.mxu0 0.0
    %511 = vmatpush1.msra.mxu0 0.0
    %512 = vmatprep.subr.mxu0 0.0
    %513 = vmatpush1.msra.mxu0 0.0
    %514 = vmatprep.subr.mxu0 0.0
    %515 = vmatpush1.msra.mxu0 0.0
    %516 = vmatprep.subr.mxu0 0.0
    %517 = vmatpush1.msra.mxu0 0.0
    %518 = vmatprep.subr.mxu0 0.0
    %519 = vmatpush1.msra.mxu0 0.0
    %520 = vmatprep.subr.mxu0 0.0
    %521 = vmatpush1.msra.mxu0 0.0
    %522 = vmatprep.subr.mxu0 0.0
    %523 = vmatpush1.msra.mxu0 0.0
    %524 = vmatprep.mubr.f32.mxu0 0.0
    %525 = vmatmul.mubr.f32.gmra.mrb[0].mxu0 %v365
    %v526 = vpop.f32.mrb[0].mxu0
    %v527 = vadd.f32 %v379, %v526
    %v528 = vpop.f32.mrb[0].mxu0
    %529 = vmatprep.mubr.f32.mxu0 0.0
    %530 = vmatmul.mubr.f32.gmra.mrb[0].mxu0 %v366
    %v531 = vpop.f32.mrb[0].mxu0
    %v532 = vadd.f32 %v379, %v531
    %v533 = vpop.f32.mrb[0].mxu0
    %534 = vdwg.mxu0
    %v536 = vlaneseq
    %v537 = vshrl.u32 %v536, 7
    %v538 = vsub.s32 0, %v537
    %v539 = vrot.slane %v248, %v538
    %v540 = vlaneseq
    %v541 = vshrl.u32 %v540, 7
    %v542 = vsub.s32 1, %v541
    %v543 = vrot.slane %v248, %v542
    %v544 = vlaneseq
    %v545 = vshrl.u32 %v544, 7
    %v546 = vsub.s32 2, %v545
    %v547 = vrot.slane %v248, %v546
    %551 = vmatprep.subr.mxu0 %v201
    %552 = vmatpush1.msra.mxu0 %v200
    %553 = vmatprep.subr.mxu0 %v204
    %554 = vmatpush1.msra.mxu0 %v203
    %555 = vmatprep.subr.mxu0 %v207
    %556 = vmatpush1.msra.mxu0 %v206
    %557 = vmatprep.subr.mxu0 %v210
    %558 = vmatpush1.msra.mxu0 %v209
    %559 = vmatprep.subr.mxu0 %v213
    %560 = vmatpush1.msra.mxu0 %v212
    %561 = vmatprep.subr.mxu0 %v216
    %562 = vmatpush1.msra.mxu0 %v215
    %563 = vmatprep.subr.mxu0 %v219
    %564 = vmatpush1.msra.mxu0 %v218
    %565 = vmatprep.subr.mxu0 %v222
    %566 = vmatpush1.msra.mxu0 %v221
    %567 = vmatprep.subr.mxu0 %v225
    %568 = vmatpush1.msra.mxu0 %v224
    %569 = vmatprep.subr.mxu0 %v228
    %570 = vmatpush1.msra.mxu0 %v227
    %571 = vmatprep.subr.mxu0 %v231
    %572 = vmatpush1.msra.mxu0 %v230
    %573 = vmatprep.subr.mxu0 %v234
    %574 = vmatpush1.msra.mxu0 %v233
    %575 = vmatprep.subr.mxu0 %v237
    %576 = vmatpush1.msra.mxu0 %v236
    %577 = vmatprep.subr.mxu0 %v240
    %578 = vmatpush1.msra.mxu0 %v239
    %579 = vmatprep.subr.mxu0 %v243
    %580 = vmatpush1.msra.mxu0 %v242
    %581 = vmatprep.subr.mxu0 %v246
    %582 = vmatpush1.msra.mxu0 %v245
    %583 = vmatprep.subr.mxu0 0.0
    %584 = vmatpush1.msra.mxu0 0.0
    %585 = vmatprep.subr.mxu0 0.0
    %586 = vmatpush1.msra.mxu0 0.0
    %587 = vmatprep.subr.mxu0 0.0
    %588 = vmatpush1.msra.mxu0 0.0
    %589 = vmatprep.subr.mxu0 0.0
    %590 = vmatpush1.msra.mxu0 0.0
    %591 = vmatprep.subr.mxu0 0.0
    %592 = vmatpush1.msra.mxu0 0.0
    %593 = vmatprep.subr.mxu0 0.0
    %594 = vmatpush1.msra.mxu0 0.0
    %595 = vmatprep.subr.mxu0 0.0
    %596 = vmatpush1.msra.mxu0 0.0
    %597 = vmatprep.subr.mxu0 0.0
    %598 = vmatpush1.msra.mxu0 0.0
    %599 = vmatprep.subr.mxu0 0.0
    %600 = vmatpush1.msra.mxu0 0.0
    %601 = vmatprep.subr.mxu0 0.0
    %602 = vmatpush1.msra.mxu0 0.0
    %603 = vmatprep.subr.mxu0 0.0
    %604 = vmatpush1.msra.mxu0 0.0
    %605 = vmatprep.subr.mxu0 0.0
    %606 = vmatpush1.msra.mxu0 0.0
    %607 = vmatprep.subr.mxu0 0.0
    %608 = vmatpush1.msra.mxu0 0.0
    %609 = vmatprep.subr.mxu0 0.0
    %610 = vmatpush1.msra.mxu0 0.0
    %611 = vmatprep.subr.mxu0 0.0
    %612 = vmatpush1.msra.mxu0 0.0
    %613 = vmatprep.subr.mxu0 0.0
    %614 = vmatpush1.msra.mxu0 0.0
    %615 = vmatprep.mubr.f32.mxu0 0.0
    %616 = vmatmul.mubr.f32.gmra.mrb[0].mxu0 %v132
    %v617 = vpop.f32.mrb[0].mxu0
    %v618 = vadd.f32 %v539, %v617
    %v619 = vpop.f32.mrb[0].mxu0
    %v620 = vadd.f32 %v543, %v619
    %621 = vmatprep.mubr.f32.mxu0 0.0
    %622 = vmatmul.mubr.f32.gmra.mrb[0].mxu0 %v133
    %v623 = vpop.f32.mrb[0].mxu0
    %v624 = vadd.f32 %v539, %v623
    %v625 = vpop.f32.mrb[0].mxu0
    %v626 = vadd.f32 %v543, %v625
    %627 = vdwg.mxu0
    %628 = vmatprep.subr.mxu0 0.0
    %629 = vmatpush1.msra.mxu0 %v202
    %630 = vmatprep.subr.mxu0 0.0
    %631 = vmatpush1.msra.mxu0 %v205
    %632 = vmatprep.subr.mxu0 0.0
    %633 = vmatpush1.msra.mxu0 %v208
    %634 = vmatprep.subr.mxu0 0.0
    %635 = vmatpush1.msra.mxu0 %v211
    %636 = vmatprep.subr.mxu0 0.0
    %637 = vmatpush1.msra.mxu0 %v214
    %638 = vmatprep.subr.mxu0 0.0
    %639 = vmatpush1.msra.mxu0 %v217
    %640 = vmatprep.subr.mxu0 0.0
    %641 = vmatpush1.msra.mxu0 %v220
    %642 = vmatprep.subr.mxu0 0.0
    %643 = vmatpush1.msra.mxu0 %v223
    %644 = vmatprep.subr.mxu0 0.0
    %645 = vmatpush1.msra.mxu0 %v226
    %646 = vmatprep.subr.mxu0 0.0
    %647 = vmatpush1.msra.mxu0 %v229
    %648 = vmatprep.subr.mxu0 0.0
    %649 = vmatpush1.msra.mxu0 %v232
    %650 = vmatprep.subr.mxu0 0.0
    %651 = vmatpush1.msra.mxu0 %v235
    %652 = vmatprep.subr.mxu0 0.0
    %653 = vmatpush1.msra.mxu0 %v238
    %654 = vmatprep.subr.mxu0 0.0
    %655 = vmatpush1.msra.mxu0 %v241
    %656 = vmatprep.subr.mxu0 0.0
    %657 = vmatpush1.msra.mxu0 %v244
    %658 = vmatprep.subr.mxu0 0.0
    %659 = vmatpush1.msra.mxu0 %v247
    %660 = vmatprep.subr.mxu0 0.0
    %661 = vmatpush1.msra.mxu0 0.0
    %662 = vmatprep.subr.mxu0 0.0
    %663 = vmatpush1.msra.mxu0 0.0
    %664 = vmatprep.subr.mxu0 0.0
    %665 = vmatpush1.msra.mxu0 0.0
    %666 = vmatprep.subr.mxu0 0.0
    %667 = vmatpush1.msra.mxu0 0.0
    %668 = vmatprep.subr.mxu0 0.0
    %669 = vmatpush1.msra.mxu0 0.0
    %670 = vmatprep.subr.mxu0 0.0
    %671 = vmatpush1.msra.mxu0 0.0
    %672 = vmatprep.subr.mxu0 0.0
    %673 = vmatpush1.msra.mxu0 0.0
    %674 = vmatprep.subr.mxu0 0.0
    %675 = vmatpush1.msra.mxu0 0.0
    %676 = vmatprep.subr.mxu0 0.0
    %677 = vmatpush1.msra.mxu0 0.0
    %678 = vmatprep.subr.mxu0 0.0
    %679 = vmatpush1.msra.mxu0 0.0
    %680 = vmatprep.subr.mxu0 0.0
    %681 = vmatpush1.msra.mxu0 0.0
    %682 = vmatprep.subr.mxu0 0.0
    %683 = vmatpush1.msra.mxu0 0.0
    %684 = vmatprep.subr.mxu0 0.0
    %685 = vmatpush1.msra.mxu0 0.0
    %686 = vmatprep.subr.mxu0 0.0
    %687 = vmatpush1.msra.mxu0 0.0
    %688 = vmatprep.subr.mxu0 0.0
    %689 = vmatpush1.msra.mxu0 0.0
    %690 = vmatprep.subr.mxu0 0.0
    %691 = vmatpush1.msra.mxu0 0.0
    %692 = vmatprep.mubr.f32.mxu0 0.0
    %693 = vmatmul.mubr.f32.gmra.mrb[0].mxu0 %v132
    %v694 = vpop.f32.mrb[0].mxu0
    %v695 = vadd.f32 %v547, %v694
    %v696 = vpop.f32.mrb[0].mxu0
    %697 = vmatprep.mubr.f32.mxu0 0.0
    %698 = vmatmul.mubr.f32.gmra.mrb[0].mxu0 %v133
    %v699 = vpop.f32.mrb[0].mxu0
    %v700 = vadd.f32 %v547, %v699
    %v701 = vpop.f32.mrb[0].mxu0
    %702 = vdwg.mxu0
    %v703 = vadd.f32 %v450, %v618
    %v704 = vadd.f32 %v456, %v624
    %v705 = vxor.u32 %v703, 2147483648
    %v706 = vxor.u32 %v704, 2147483648
    %v707 = vmul.f32 %v705, 1.442695
    %v708 = vpow.pop %v707
    %v709 = vmul.f32 %v706, 1.442695
    %v710 = vpow.pop %v709
    %v711 = vadd.f32 %v708, 1.0
    %v712 = vadd.f32 %v710, 1.0
    %v713 = vrcp.pop %v711
    %v714 = vmul.f32 1.0, %v713
    %v715 = vrcp.pop %v712
    %v716 = vmul.f32 1.0, %v715
    %v717 = vadd.f32 %v452, %v620
    %v718 = vadd.f32 %v458, %v626
    %v719 = vxor.u32 %v717, 2147483648
    %v720 = vxor.u32 %v718, 2147483648
    %v721 = vmul.f32 %v719, 1.442695
    %v722 = vpow.pop %v721
    %v723 = vmul.f32 %v720, 1.442695
    %v724 = vpow.pop %v723
    %v725 = vadd.f32 %v722, 1.0
    %v726 = vadd.f32 %v724, 1.0
    %v727 = vrcp.pop %v725
    %v728 = vmul.f32 1.0, %v727
    %v729 = vrcp.pop %v726
    %v730 = vmul.f32 1.0, %v729
    %v731 = vmul.f32 %v714, %v695
    %v732 = vmul.f32 %v716, %v700
    %v733 = vadd.f32 %v527, %v731
    %v734 = vadd.f32 %v532, %v732
    %v735 = vtanh.pop %v733
    %v736 = vtanh.pop %v734
    %v737 = vsub.f32 1.0, %v728
    %v738 = vsub.f32 1.0, %v730
    %v739 = vmul.f32 %v737, %v735
    %v740 = vmul.f32 %v738, %v736
    %v741 = vmul.f32 %v728, %v132
    %v742 = vmul.f32 %v730, %v133
    %v743 = vadd.f32 %v739, %v741
    %v744 = vadd.f32 %v740, %v742
    %v745 = vmax.f32 %v743, 0.0
    %v746 = vmax.f32 %v744, 0.0
    %v748 = vlaneseq
    %v749 = vshrl.u32 %v748, 7
    %v750 = vsub.s32 0, %v749
    %v751 = vrot.slane %v265, %v750
    %753 = vmatprep.subr.mxu0 0.0
    %754 = vmatpush1.msra.mxu0 %v249
    %755 = vmatprep.subr.mxu0 0.0
    %756 = vmatpush1.msra.mxu0 %v250
    %757 = vmatprep.subr.mxu0 0.0
    %758 = vmatpush1.msra.mxu0 %v251
    %759 = vmatprep.subr.mxu0 0.0
    %760 = vmatpush1.msra.mxu0 %v252
    %761 = vmatprep.subr.mxu0 0.0
    %762 = vmatpush1.msra.mxu0 %v253
    %763 = vmatprep.subr.mxu0 0.0
    %764 = vmatpush1.msra.mxu0 %v254
    %765 = vmatprep.subr.mxu0 0.0
    %766 = vmatpush1.msra.mxu0 %v255
    %767 = vmatprep.subr.mxu0 0.0
    %768 = vmatpush1.msra.mxu0 %v256
    %769 = vmatprep.subr.mxu0 0.0
    %770 = vmatpush1.msra.mxu0 %v257
    %771 = vmatprep.subr.mxu0 0.0
    %772 = vmatpush1.msra.mxu0 %v258
    %773 = vmatprep.subr.mxu0 0.0
    %774 = vmatpush1.msra.mxu0 %v259
    %775 = vmatprep.subr.mxu0 0.0
    %776 = vmatpush1.msra.mxu0 %v260
    %777 = vmatprep.subr.mxu0 0.0
    %778 = vmatpush1.msra.mxu0 %v261
    %779 = vmatprep.subr.mxu0 0.0
    %780 = vmatpush1.msra.mxu0 %v262
    %781 = vmatprep.subr.mxu0 0.0
    %782 = vmatpush1.msra.mxu0 %v263
    %783 = vmatprep.subr.mxu0 0.0
    %784 = vmatpush1.msra.mxu0 %v264
    %785 = vmatprep.subr.mxu0 0.0
    %786 = vmatpush1.msra.mxu0 0.0
    %787 = vmatprep.subr.mxu0 0.0
    %788 = vmatpush1.msra.mxu0 0.0
    %789 = vmatprep.subr.mxu0 0.0
    %790 = vmatpush1.msra.mxu0 0.0
    %791 = vmatprep.subr.mxu0 0.0
    %792 = vmatpush1.msra.mxu0 0.0
    %793 = vmatprep.subr.mxu0 0.0
    %794 = vmatpush1.msra.mxu0 0.0
    %795 = vmatprep.subr.mxu0 0.0
    %796 = vmatpush1.msra.mxu0 0.0
    %797 = vmatprep.subr.mxu0 0.0
    %798 = vmatpush1.msra.mxu0 0.0
    %799 = vmatprep.subr.mxu0 0.0
    %800 = vmatpush1.msra.mxu0 0.0
    %801 = vmatprep.subr.mxu0 0.0
    %802 = vmatpush1.msra.mxu0 0.0
    %803 = vmatprep.subr.mxu0 0.0
    %804 = vmatpush1.msra.mxu0 0.0
    %805 = vmatprep.subr.mxu0 0.0
    %806 = vmatpush1.msra.mxu0 0.0
    %807 = vmatprep.subr.mxu0 0.0
    %808 = vmatpush1.msra.mxu0 0.0
    %809 = vmatprep.subr.mxu0 0.0
    %810 = vmatpush1.msra.mxu0 0.0
    %811 = vmatprep.subr.mxu0 0.0
    %812 = vmatpush1.msra.mxu0 0.0
    %813 = vmatprep.subr.mxu0 0.0
    %814 = vmatpush1.msra.mxu0 0.0
    %815 = vmatprep.subr.mxu0 0.0
    %816 = vmatpush1.msra.mxu0 0.0
    %817 = vmatprep.mubr.f32.mxu0 0.0
    %818 = vmatmul.mubr.f32.gmra.mrb[0].mxu0 %v745
    %v819 = vpop.f32.mrb[0].mxu0
    %v820 = vadd.f32 %v751, %v819
    %v821 = vpop.f32.mrb[0].mxu0
    %822 = vmatprep.mubr.f32.mxu0 0.0
    %823 = vmatmul.mubr.f32.gmra.mrb[0].mxu0 %v746
    %v824 = vpop.f32.mrb[0].mxu0
    %v825 = vadd.f32 %v751, %v824
    %v826 = vpop.f32.mrb[0].mxu0
    %827 = vdwg.mxu0
    %v828 = vmax.f32 %v820, 0.0
    %v829 = vmax.f32 %v825, 0.0
    %v831 = vlaneseq
    %v832 = vshrl.u32 %v831, 7
    %v833 = vsub.s32 0, %v832
    %v834 = vrot.slane %v282, %v833
    %836 = vmatprep.subr.mxu0 0.0
    %837 = vmatpush1.msra.mxu0 %v266
    %838 = vmatprep.subr.mxu0 0.0
    %839 = vmatpush1.msra.mxu0 %v267
    %840 = vmatprep.subr.mxu0 0.0
    %841 = vmatpush1.msra.mxu0 %v268
    %842 = vmatprep.subr.mxu0 0.0
    %843 = vmatpush1.msra.mxu0 %v269
    %844 = vmatprep.subr.mxu0 0.0
    %845 = vmatpush1.msra.mxu0 %v270
    %846 = vmatprep.subr.mxu0 0.0
    %847 = vmatpush1.msra.mxu0 %v271
    %848 = vmatprep.subr.mxu0 0.0
    %849 = vmatpush1.msra.mxu0 %v272
    %850 = vmatprep.subr.mxu0 0.0
    %851 = vmatpush1.msra.mxu0 %v273
    %852 = vmatprep.subr.mxu0 0.0
    %853 = vmatpush1.msra.mxu0 %v274
    %854 = vmatprep.subr.mxu0 0.0
    %855 = vmatpush1.msra.mxu0 %v275
    %856 = vmatprep.subr.mxu0 0.0
    %857 = vmatpush1.msra.mxu0 %v276
    %858 = vmatprep.subr.mxu0 0.0
    %859 = vmatpush1.msra.mxu0 %v277
    %860 = vmatprep.subr.mxu0 0.0
    %861 = vmatpush1.msra.mxu0 %v278
    %862 = vmatprep.subr.mxu0 0.0
    %863 = vmatpush1.msra.mxu0 %v279
    %864 = vmatprep.subr.mxu0 0.0
    %865 = vmatpush1.msra.mxu0 %v280
    %866 = vmatprep.subr.mxu0 0.0
    %867 = vmatpush1.msra.mxu0 %v281
    %868 = vmatprep.subr.mxu0 0.0
    %869 = vmatpush1.msra.mxu0 0.0
    %870 = vmatprep.subr.mxu0 0.0
    %871 = vmatpush1.msra.mxu0 0.0
    %872 = vmatprep.subr.mxu0 0.0
    %873 = vmatpush1.msra.mxu0 0.0
    %874 = vmatprep.subr.mxu0 0.0
    %875 = vmatpush1.msra.mxu0 0.0
    %876 = vmatprep.subr.mxu0 0.0
    %877 = vmatpush1.msra.mxu0 0.0
    %878 = vmatprep.subr.mxu0 0.0
    %879 = vmatpush1.msra.mxu0 0.0
    %880 = vmatprep.subr.mxu0 0.0
    %881 = vmatpush1.msra.mxu0 0.0
    %882 = vmatprep.subr.mxu0 0.0
    %883 = vmatpush1.msra.mxu0 0.0
    %884 = vmatprep.subr.mxu0 0.0
    %885 = vmatpush1.msra.mxu0 0.0
    %886 = vmatprep.subr.mxu0 0.0
    %887 = vmatpush1.msra.mxu0 0.0
    %888 = vmatprep.subr.mxu0 0.0
    %889 = vmatpush1.msra.mxu0 0.0
    %890 = vmatprep.subr.mxu0 0.0
    %891 = vmatpush1.msra.mxu0 0.0
    %892 = vmatprep.subr.mxu0 0.0
    %893 = vmatpush1.msra.mxu0 0.0
    %894 = vmatprep.subr.mxu0 0.0
    %895 = vmatpush1.msra.mxu0 0.0
    %896 = vmatprep.subr.mxu0 0.0
    %897 = vmatpush1.msra.mxu0 0.0
    %898 = vmatprep.subr.mxu0 0.0
    %899 = vmatpush1.msra.mxu0 0.0
    %900 = vmatprep.mubr.f32.mxu0 0.0
    %901 = vmatmul.mubr.f32.gmra.mrb[0].mxu0 %v828
    %v902 = vpop.f32.mrb[0].mxu0
    %v903 = vadd.f32 %v834, %v902
    %v904 = vpop.f32.mrb[0].mxu0
    %905 = vmatprep.mubr.f32.mxu0 0.0
    %906 = vmatmul.mubr.f32.gmra.mrb[0].mxu0 %v829
    %v907 = vpop.f32.mrb[0].mxu0
    %v908 = vadd.f32 %v834, %v907
    %v909 = vpop.f32.mrb[0].mxu0
    %910 = vdwg.mxu0
    %v911 = vmul.f32 %v903, 1.442695
    %v912 = vpow.pop %v911
    %v913 = vmul.f32 %v908, 1.442695
    %v914 = vpow.pop %v913
    %915 = vmax.xlane.f32.xlu0 %v912
    %v916 = vpop.xlane.xlu0 %915
    %917 = vmax.xlane.f32.xlu0 %v914
    %v918 = vpop.xlane.xlu0 %917
    %v919 = vsub.f32 %v912, %v916
    %v920 = vsub.f32 %v914, %v918
    %v921 = vmul.f32 %v919, 1.442695
    %v922 = vpow.pop %v921
    %v923 = vmul.f32 %v920, 1.442695
    %v924 = vpow.pop %v923
    %v926 = vlaneseq
    %v927 = vshrl.u32 %v926, 7
    %v928 = vsub.s32 0, %v927
    %v929 = vrot.slane %v283, %v928
    %v931 = vmul.f32 %v922, %v929
    %v932 = vmul.f32 %v924, %v929
    %933 = vadd.xlane.f32.xlu0 %v931
    %v934 = vpop.xlane.xlu0 %933
    %935 = vadd.xlane.f32.xlu0 %v932
    %v936 = vpop.xlane.xlu0 %935
    %v937 = vrcp.pop %v934
    %v938 = vrcp.pop %v936
    %v939 = vmul.f32 %v934, %v937
    %v940 = vmul.f32 %v936, %v938
    %v941 = vsub.f32 2.0, %v939
    %v942 = vsub.f32 2.0, %v940
    %v943 = vmul.f32 %v937, %v941
    %v944 = vmul.f32 %v938, %v942
    %v945 = vmul.f32 %v931, %v943
    %v946 = vmul.f32 %v932, %v944
    %947 = vst [vmem:[#allocation13] sm:$0xff] %v945
    %948 = vst [vmem:[#allocation13 + $0x8] sm:$0xff] %v946
    %949 = vst [vmem:[#allocation14] sm:$0xff] %v745
    %950 = vst [vmem:[#allocation14 + $0x8] sm:$0xff] %v746
    // Predicated region
    $region78: #{tpu_custom_call.1} parent=1 // pred_check
      _
    $region79: #{tpu_custom_call.1} parent=1 // pred_check_branch
      %952 = sbr.rel (0) target = $region81
    $region80: #{tpu_custom_call.1} parent=1 // pred_region
      %s954 = ssub.s32 256, 256
      %955 = vsyncadd [#allocation4], %s954
      %s956 = sshll.u32 [#allocation13], 4
      %s957 = int_to_ptr.vmem [resolvable:$true] %s956
      %962 = dma.vmem_to_hbm [thread:$0]  %s957, 256, %s13, [#allocation4], 128, 128, 8
    $region81: #{tpu_custom_call.1} parent=1 // pred_fallthru
      _
    // Predicated region
    $region82: #{tpu_custom_call.1} parent=1 // pred_check
      _
    $region83: #{tpu_custom_call.1} parent=1 // pred_check_branch
      %964 = sbr.rel (0) target = $region85
    $region84: #{tpu_custom_call.1} parent=1 // pred_region
      %s966 = ssub.s32 256, 256
      %967 = vsyncadd [#allocation15], %s966
      %s968 = sshll.u32 [#allocation14], 4
      %s969 = int_to_ptr.vmem [resolvable:$true] %s968
      %974 = dma.vmem_to_hbm [thread:$0]  %s969, 256, %s14, [#allocation15], 128, 128, 8
    $region85: #{tpu_custom_call.1} parent=1 // pred_fallthru
      _
    // Predicated region
    $region86: #{tpu_custom_call.1} parent=1 // pred_check
      _
    $region87: #{tpu_custom_call.1} parent=1 // pred_check_branch
      %976 = sbr.rel (0) target = $region89
    $region88: #{tpu_custom_call.1} parent=1 // pred_region
      %977 = dma.done [#allocation4], 256
    $region89: #{tpu_custom_call.1} parent=1 // pred_fallthru
      _
    // Predicated region
    $region90: #{tpu_custom_call.1} parent=1 // pred_check
      _
    $region91: #{tpu_custom_call.1} parent=1 // pred_check_branch
      %979 = sbr.rel (0) target = $region93
    $region92: #{tpu_custom_call.1} parent=1 // pred_region
      %980 = dma.done [#allocation15], 256
    $region93: #{tpu_custom_call.1} parent=1 // pred_fallthru
      _
    %981 = vsyncpa [#allocation3], 1
    %982 = vsyncpa [#allocation6], 1
    %983 = vsyncpa [#allocation9], 1
    %984 = vsyncpa [#allocation12], 1
    %985 = vsyncpa [#allocation4], 1
    %986 = vsyncpa [#allocation15], 1

// kernel: tpu_custom_call.1
$region0: #{tpu_custom_call.1}
  #allocation0 [shape = 'u32[]', space=smem, size = 0x4, offset = 0x4, fixed_abs, tag = 'smem constant byte address 0x4 - core index']
  #allocation1 [shape = 'u32[144,128]{1,0:T(1,128)}', space=vmem, size = 0x12000, scoped, tag = 'internal scratch']
  %s0 = inlined_call_operand.vmem [shape: f32[16,128], index: 0, kind: input, shape index: {}]
  %s1 = inlined_call_operand.hbm [shape: f32[16,128], index: 1, kind: input, shape index: {}, may-alias: {1,14}]
  %s2 = inlined_call_operand.hbm [shape: f32[128,128], index: 2, kind: input, shape index: {}]
  %s3 = inlined_call_operand.vmem [shape: f32[1,128], index: 3, kind: input, shape index: {}]
  %s4 = inlined_call_operand.hbm [shape: f32[128,384], index: 4, kind: input, shape index: {}]
  %s5 = inlined_call_operand.vmem [shape: f32[1,384], index: 5, kind: input, shape index: {}]
  %s6 = inlined_call_operand.hbm [shape: f32[128,384], index: 6, kind: input, shape index: {}]
  %s7 = inlined_call_operand.vmem [shape: f32[1,384], index: 7, kind: input, shape index: {}]
  %s8 = inlined_call_operand.hbm [shape: f32[128,128], index: 8, kind: input, shape index: {}]
  %s9 = inlined_call_operand.vmem [shape: f32[1,128], index: 9, kind: input, shape index: {}]
  %s10 = inlined_call_operand.hbm [shape: f32[128,128], index: 10, kind: input, shape index: {}]
  %s11 = inlined_call_operand.vmem [shape: f32[1,128], index: 11, kind: input, shape index: {}]
  %s12 = inlined_call_operand.vmem [shape: f32[1,128], index: 12, kind: input, shape index: {}]
  %s13 = inlined_call_operand.hbm [shape: f32[16,128], index: 13, kind: output, shape index: {0}]
  %s14 = inlined_call_operand.hbm [shape: f32[16,128], index: 14, kind: output, shape index: {1}, may-alias: {1,14}]
  %15 = xla_tuple %s13, %s14
  %s16 = sld [smem:[#allocation0]]
  $region94: #{tpu_custom_call.1} parent=0
    _
  %s18 = ssub.s32 1, %s16
  %s19 = scalar_select 0, %s18, %s16
  $region1: #{tpu_custom_call.1} parent=0
    #allocation2 [shape = 'u8[8192]{0}', space=vmem, size = 0x2000, scoped, tag = 'input window, operand 1, single buffered']
    #allocation3 [shape = 's32[1]{0}', space=sflag, size = 0x4, scoped, tag = 'scoped memory for tpu_custom_call.1']
    #allocation4 [shape = 's32[1]{0}', space=sflag, size = 0x4, scoped, tag = 'scoped memory for tpu_custom_call.1']
    #allocation5 [shape = 'u8[65536]{0}', space=vmem, size = 0x10000, scoped, tag = 'input window, operand 2, single buffered']
    #allocation6 [shape = 's32[1]{0}', space=sflag, size = 0x4, scoped, tag = 'scoped memory for tpu_custom_call.1']
    #allocation7 [shape = 'u8[196608]{0}', space=vmem, size = 0x30000, scoped, tag = 'input window, operand 4, single buffered']
    #allocation8 [shape = 'u8[196608]{0}', space=vmem, size = 0x30000, scoped, tag = 'input window, operand 6, single buffered']
    #allocation9 [shape = 's32[1]{0}', space=sflag, size = 0x4, scoped, tag = 'scoped memory for tpu_custom_call.1']
    #allocation10 [shape = 'u8[65536]{0}', space=vmem, size = 0x10000, scoped, tag = 'input window, operand 8, single buffered']
    #allocation11 [shape = 'u8[65536]{0}', space=vmem, size = 0x10000, scoped, tag = 'input window, operand 10, single buffered']
    #allocation12 [shape = 's32[1]{0}', space=sflag, size = 0x4, scoped, tag = 'scoped memory for tpu_custom_call.1']
    #allocation13 [shape = 'u8[8192]{0}', space=vmem, size = 0x2000, scoped, tag = 'output window, operand 0, single buffered']
    #allocation14 [shape = 'u8[8192]{0}', space=vmem, size = 0x2000, scoped, tag = 'output window, operand 1, single buffered']
    #allocation15 [shape = 's32[1]{0}', space=sflag, size = 0x4, scoped, tag = 'scoped memory for tpu_custom_call.1']
    %20 = vsyncpa [#allocation3], 0
    %21 = vsyncpa [#allocation6], 0
    %22 = vsyncpa [#allocation9], 0
    %23 = vsyncpa [#allocation12], 0
    %24 = vsyncpa [#allocation4], 0
    %25 = vsyncpa [#allocation15], 0
    // Predicated region
    $region2: #{tpu_custom_call.1} parent=1 // pred_check
      _
    $region3: #{tpu_custom_call.1} parent=1 // pred_check_branch
      %27 = sbr.rel (0) target = $region5
    $region4: #{tpu_custom_call.1} parent=1 // pred_region
      _
    $region5: #{tpu_custom_call.1} parent=1 // pred_fallthru
      _
    // Predicated region
    $region6: #{tpu_custom_call.1} parent=1 // pred_check
      _
    $region7: #{tpu_custom_call.1} parent=1 // pred_check_branch
      %29 = sbr.rel (0) target = $region9
    $region8: #{tpu_custom_call.1} parent=1 // pred_region
      %s31 = ssub.s32 256, 256
      %32 = vsyncadd [#allocation3], %s31
      %s33 = sshll.u32 [#allocation2], 4
      %s34 = int_to_ptr.vmem [resolvable:$true] %s33
      %39 = dma.hbm_to_vmem [thread:$0]  %s1, 256, %s34, [#allocation3], 128, 128, 8
    $region9: #{tpu_custom_call.1} parent=1 // pred_fallthru
      _
    // Predicated region
    $region10: #{tpu_custom_call.1} parent=1 // pred_check
      _
    $region11: #{tpu_custom_call.1} parent=1 // pred_check_branch
      %41 = sbr.rel (0) target = $region13
    $region12: #{tpu_custom_call.1} parent=1 // pred_region
      %s43 = ssub.s32 2048, 2048
      %44 = vsyncadd [#allocation6], %s43
      %s45 = sshll.u32 [#allocation5], 4
      %s46 = int_to_ptr.vmem [resolvable:$true] %s45
      %51 = dma.hbm_to_vmem [thread:$0]  %s2, 2048, %s46, [#allocation6], 128, 128, 8
    $region13: #{tpu_custom_call.1} parent=1 // pred_fallthru
      _
    // Predicated region
    $region14: #{tpu_custom_call.1} parent=1 // pred_check
      _
    $region15: #{tpu_custom_call.1} parent=1 // pred_check_branch
      %53 = sbr.rel (0) target = $region17
    $region16: #{tpu_custom_call.1} parent=1 // pred_region
      _
    $region17: #{tpu_custom_call.1} parent=1 // pred_fallthru
      _
    // Predicated region
    $region18: #{tpu_custom_call.1} parent=1 // pred_check
      _
    $region19: #{tpu_custom_call.1} parent=1 // pred_check_branch
      %55 = sbr.rel (0) target = $region21
    $region20: #{tpu_custom_call.1} parent=1 // pred_region
      %s57 = ssub.s32 6144, 6144
      %58 = vsyncadd [#allocation6], %s57
      %s59 = sshll.u32 [#allocation7], 4
      %s60 = int_to_ptr.vmem [resolvable:$true] %s59
      %65 = dma.hbm_to_vmem [thread:$0]  %s4, 6144, %s60, [#allocation6], 384, 384, 24
    $region21: #{tpu_custom_call.1} parent=1 // pred_fallthru
      _
    // Predicated region
    $region22: #{tpu_custom_call.1} parent=1 // pred_check
      _
    $region23: #{tpu_custom_call.1} parent=1 // pred_check_branch
      %67 = sbr.rel (0) target = $region25
    $region24: #{tpu_custom_call.1} parent=1 // pred_region
      _
    $region25: #{tpu_custom_call.1} parent=1 // pred_fallthru
      _
    // Predicated region
    $region26: #{tpu_custom_call.1} parent=1 // pred_check
      _
    $region27: #{tpu_custom_call.1} parent=1 // pred_check_branch
      %69 = sbr.rel (0) target = $region29
    $region28: #{tpu_custom_call.1} parent=1 // pred_region
      %s71 = ssub.s32 6144, 6144
      %72 = vsyncadd [#allocation9], %s71
      %s73 = sshll.u32 [#allocation8], 4
      %s74 = int_to_ptr.vmem [resolvable:$true] %s73
      %79 = dma.hbm_to_vmem [thread:$0]  %s6, 6144, %s74, [#allocation9], 384, 384, 24
    $region29: #{tpu_custom_call.1} parent=1 // pred_fallthru
      _
    // Predicated region
    $region30: #{tpu_custom_call.1} parent=1 // pred_check
      _
    $region31: #{tpu_custom_call.1} parent=1 // pred_check_branch
      %81 = sbr.rel (0) target = $region33
    $region32: #{tpu_custom_call.1} parent=1 // pred_region
      _
    $region33: #{tpu_custom_call.1} parent=1 // pred_fallthru
      _
    // Predicated region
    $region34: #{tpu_custom_call.1} parent=1 // pred_check
      _
    $region35: #{tpu_custom_call.1} parent=1 // pred_check_branch
      %83 = sbr.rel (0) target = $region37
    $region36: #{tpu_custom_call.1} parent=1 // pred_region
      %s85 = ssub.s32 2048, 2048
      %86 = vsyncadd [#allocation9], %s85
      %s87 = sshll.u32 [#allocation10], 4
      %s88 = int_to_ptr.vmem [resolvable:$true] %s87
      %93 = dma.hbm_to_vmem [thread:$0]  %s8, 2048, %s88, [#allocation9], 128, 128, 8
    $region37: #{tpu_custom_call.1} parent=1 // pred_fallthru
      _
    // Predicated region
    $region38: #{tpu_custom_call.1} parent=1 // pred_check
      _
    $region39: #{tpu_custom_call.1} parent=1 // pred_check_branch
      %95 = sbr.rel (0) target = $region41
    $region40: #{tpu_custom_call.1} parent=1 // pred_region
      _
    $region41: #{tpu_custom_call.1} parent=1 // pred_fallthru
      _
    // Predicated region
    $region42: #{tpu_custom_call.1} parent=1 // pred_check
      _
    $region43: #{tpu_custom_call.1} parent=1 // pred_check_branch
      %97 = sbr.rel (0) target = $region45
    $region44: #{tpu_custom_call.1} parent=1 // pred_region
      %s99 = ssub.s32 2048, 2048
      %100 = vsyncadd [#allocation12], %s99
      %s101 = sshll.u32 [#allocation11], 4
      %s102 = int_to_ptr.vmem [resolvable:$true] %s101
      %107 = dma.hbm_to_vmem [thread:$0]  %s10, 2048, %s102, [#allocation12], 128, 128, 8
    $region45: #{tpu_custom_call.1} parent=1 // pred_fallthru
      _
    // Predicated region
    $region46: #{tpu_custom_call.1} parent=1 // pred_check
      _
    $region47: #{tpu_custom_call.1} parent=1 // pred_check_branch
      %109 = sbr.rel (0) target = $region49
    $region48: #{tpu_custom_call.1} parent=1 // pred_region
      _
    $region49: #{tpu_custom_call.1} parent=1 // pred_fallthru
      _
    // Predicated region
    $region50: #{tpu_custom_call.1} parent=1 // pred_check
      _
    $region51: #{tpu_custom_call.1} parent=1 // pred_check_branch
      %111 = sbr.rel (0) target = $region53
    $region52: #{tpu_custom_call.1} parent=1 // pred_region
      _
    $region53: #{tpu_custom_call.1} parent=1 // pred_fallthru
      _
    // Predicated region
    $region54: #{tpu_custom_call.1} parent=1 // pred_check
      _
    $region55: #{tpu_custom_call.1} parent=1 // pred_check_branch
      %113 = sbr.rel (0) target = $region57
    $region56: #{tpu_custom_call.1} parent=1 // pred_region
      %114 = dma.done [#allocation3], 256
    $region57: #{tpu_custom_call.1} parent=1 // pred_fallthru
      _
    // Predicated region
    $region58: #{tpu_custom_call.1} parent=1 // pred_check
      _
    $region59: #{tpu_custom_call.1} parent=1 // pred_check_branch
      %116 = sbr.rel (0) target = $region61
    $region60: #{tpu_custom_call.1} parent=1 // pred_region
      %117 = dma.done [#allocation6], 2048
    $region61: #{tpu_custom_call.1} parent=1 // pred_fallthru
      _
    // Predicated region
    $region62: #{tpu_custom_call.1} parent=1 // pred_check
      _
    $region63: #{tpu_custom_call.1} parent=1 // pred_check_branch
      %119 = sbr.rel (0) target = $region65
    $region64: #{tpu_custom_call.1} parent=1 // pred_region
      %120 = dma.done [#allocation6], 6144
    $region65: #{tpu_custom_call.1} parent=1 // pred_fallthru
      _
    // Predicated region
    $region66: #{tpu_custom_call.1} parent=1 // pred_check
      _
    $region67: #{tpu_custom_call.1} parent=1 // pred_check_branch
      %122 = sbr.rel (0) target = $region69
    $region68: #{tpu_custom_call.1} parent=1 // pred_region
      %123 = dma.done [#allocation9], 6144
    $region69: #{tpu_custom_call.1} parent=1 // pred_fallthru
      _
    // Predicated region
    $region70: #{tpu_custom_call.1} parent=1 // pred_check
      _
    $region71: #{tpu_custom_call.1} parent=1 // pred_check_branch
      %125 = sbr.rel (0) target = $region73
    $region72: #{tpu_custom_call.1} parent=1 // pred_region
      %126 = dma.done [#allocation9], 2048
    $region73: #{tpu_custom_call.1} parent=1 // pred_fallthru
      _
    // Predicated region
    $region74: #{tpu_custom_call.1} parent=1 // pred_check
      _
    $region75: #{tpu_custom_call.1} parent=1 // pred_check_branch
      %128 = sbr.rel (0) target = $region77
    $region76: #{tpu_custom_call.1} parent=1 // pred_region
      %129 = dma.done [#allocation12], 2048
    $region77: #{tpu_custom_call.1} parent=1 // pred_fallthru
      _
    %v130 = vld [vmem:[%s0] sm:$0xff]
    %v131 = vld [vmem:[%s0 + $0x8] sm:$0xff]
    %v132 = vld [vmem:[#allocation2] sm:$0xff]
    %v133 = vld [vmem:[#allocation2 + $0x8] sm:$0xff]
    %v134 = vld [vmem:[#allocation5] sm:$0xff]
    %v135 = vld [vmem:[#allocation5 + $0x8] sm:$0xff]
    %v136 = vld [vmem:[#allocation5 + $0x10] sm:$0xff]
    %v137 = vld [vmem:[#allocation5 + $0x18] sm:$0xff]
    %v138 = vld [vmem:[#allocation5 + $0x20] sm:$0xff]
    %v139 = vld [vmem:[#allocation5 + $0x28] sm:$0xff]
    %v140 = vld [vmem:[#allocation5 + $0x30] sm:$0xff]
    %v141 = vld [vmem:[#allocation5 + $0x38] sm:$0xff]
    %v142 = vld [vmem:[#allocation5 + $0x40] sm:$0xff]
    %v143 = vld [vmem:[#allocation5 + $0x48] sm:$0xff]
    %v144 = vld [vmem:[#allocation5 + $0x50] sm:$0xff]
    %v145 = vld [vmem:[#allocation5 + $0x58] sm:$0xff]
    %v146 = vld [vmem:[#allocation5 + $0x60] sm:$0xff]
    %v147 = vld [vmem:[#allocation5 + $0x68] sm:$0xff]
    %v148 = vld [vmem:[#allocation5 + $0x70] sm:$0xff]
    %v149 = vld [vmem:[#allocation5 + $0x78] sm:$0xff]
    %v150 = vld [vmem:[%s3] sm:$0x1]
    %v151 = vld [vmem:[#allocation7] sm:$0xff]
    %v152 = vld [vmem:[#allocation7 + $0x8] sm:$0xff]
    %v153 = vld [vmem:[#allocation7 + $0x10] sm:$0xff]
    %v154 = vld [vmem:[#allocation7 + $0x18] sm:$0xff]
    %v155 = vld [vmem:[#allocation7 + $0x20] sm:$0xff]
    %v156 = vld [vmem:[#allocation7 + $0x28] sm:$0xff]
    %v157 = vld [vmem:[#allocation7 + $0x30] sm:$0xff]
    %v158 = vld [vmem:[#allocation7 + $0x38] sm:$0xff]
    %v159 = vld [vmem:[#allocation7 + $0x40] sm:$0xff]
    %v160 = vld [vmem:[#allocation7 + $0x48] sm:$0xff]
    %v161 = vld [vmem:[#allocation7 + $0x50] sm:$0xff]
    %v162 = vld [vmem:[#allocation7 + $0x58] sm:$0xff]
    %v163 = vld [vmem:[#allocation7 + $0x60] sm:$0xff]
    %v164 = vld [vmem:[#allocation7 + $0x68] sm:$0xff]
    %v165 = vld [vmem:[#allocation7 + $0x70] sm:$0xff]
    %v166 = vld [vmem:[#allocation7 + $0x78] sm:$0xff]
    %v167 = vld [vmem:[#allocation7 + $0x80] sm:$0xff]
    %v168 = vld [vmem:[#allocation7 + $0x88] sm:$0xff]
    %v169 = vld [vmem:[#allocation7 + $0x90] sm:$0xff]
    %v170 = vld [vmem:[#allocation7 + $0x98] sm:$0xff]
    %v171 = vld [vmem:[#allocation7 + $0xa0] sm:$0xff]
    %v172 = vld [vmem:[#allocation7 + $0xa8] sm:$0xff]
    %v173 = vld [vmem:[#allocation7 + $0xb0] sm:$0xff]
    %v174 = vld [vmem:[#allocation7 + $0xb8] sm:$0xff]
    %v175 = vld [vmem:[#allocation7 + $0xc0] sm:$0xff]
    %v176 = vld [vmem:[#allocation7 + $0xc8] sm:$0xff]
    %v177 = vld [vmem:[#allocation7 + $0xd0] sm:$0xff]
    %v178 = vld [vmem:[#allocation7 + $0xd8] sm:$0xff]
    %v179 = vld [vmem:[#allocation7 + $0xe0] sm:$0xff]
    %v180 = vld [vmem:[#allocation7 + $0xe8] sm:$0xff]
    %v181 = vld [vmem:[#allocation7 + $0xf0] sm:$0xff]
    %v182 = vld [vmem:[#allocation7 + $0xf8] sm:$0xff]
    %v183 = vld [vmem:[#allocation7 + $0x100] sm:$0xff]
    %v184 = vld [vmem:[#allocation7 + $0x108] sm:$0xff]
    %v185 = vld [vmem:[#allocation7 + $0x110] sm:$0xff]
    %v186 = vld [vmem:[#allocation7 + $0x118] sm:$0xff]
    %v187 = vld [vmem:[#allocation7 + $0x120] sm:$0xff]
    %v188 = vld [vmem:[#allocation7 + $0x128] sm:$0xff]
    %v189 = vld [vmem:[#allocation7 + $0x130] sm:$0xff]
    %v190 = vld [vmem:[#allocation7 + $0x138] sm:$0xff]
    %v191 = vld [vmem:[#allocation7 + $0x140] sm:$0xff]
    %v192 = vld [vmem:[#allocation7 + $0x148] sm:$0xff]
    %v193 = vld [vmem:[#allocation7 + $0x150] sm:$0xff]
    %v194 = vld [vmem:[#allocation7 + $0x158] sm:$0xff]
    %v195 = vld [vmem:[#allocation7 + $0x160] sm:$0xff]
    %v196 = vld [vmem:[#allocation7 + $0x168] sm:$0xff]
    %v197 = vld [vmem:[#allocation7 + $0x170] sm:$0xff]
    %v198 = vld [vmem:[#allocation7 + $0x178] sm:$0xff]
    %v199 = vld [vmem:[%s5] sm:$0x7]
    %v200 = vld [vmem:[#allocation8] sm:$0xff]
    %v201 = vld [vmem:[#allocation8 + $0x8] sm:$0xff]
    %v202 = vld [vmem:[#allocation8 + $0x10] sm:$0xff]
    %v203 = vld [vmem:[#allocation8 + $0x18] sm:$0xff]
    %v204 = vld [vmem:[#allocation8 + $0x20] sm:$0xff]
    %v205 = vld [vmem:[#allocation8 + $0x28] sm:$0xff]
    %v206 = vld [vmem:[#allocation8 + $0x30] sm:$0xff]
    %v207 = vld [vmem:[#allocation8 + $0x38] sm:$0xff]
    %v208 = vld [vmem:[#allocation8 + $0x40] sm:$0xff]
    %v209 = vld [vmem:[#allocation8 + $0x48] sm:$0xff]
    %v210 = vld [vmem:[#allocation8 + $0x50] sm:$0xff]
    %v211 = vld [vmem:[#allocation8 + $0x58] sm:$0xff]
    %v212 = vld [vmem:[#allocation8 + $0x60] sm:$0xff]
    %v213 = vld [vmem:[#allocation8 + $0x68] sm:$0xff]
    %v214 = vld [vmem:[#allocation8 + $0x70] sm:$0xff]
    %v215 = vld [vmem:[#allocation8 + $0x78] sm:$0xff]
    %v216 = vld [vmem:[#allocation8 + $0x80] sm:$0xff]
    %v217 = vld [vmem:[#allocation8 + $0x88] sm:$0xff]
    %v218 = vld [vmem:[#allocation8 + $0x90] sm:$0xff]
    %v219 = vld [vmem:[#allocation8 + $0x98] sm:$0xff]
    %v220 = vld [vmem:[#allocation8 + $0xa0] sm:$0xff]
    %v221 = vld [vmem:[#allocation8 + $0xa8] sm:$0xff]
    %v222 = vld [vmem:[#allocation8 + $0xb0] sm:$0xff]
    %v223 = vld [vmem:[#allocation8 + $0xb8] sm:$0xff]
    %v224 = vld [vmem:[#allocation8 + $0xc0] sm:$0xff]
    %v225 = vld [vmem:[#allocation8 + $0xc8] sm:$0xff]
    %v226 = vld [vmem:[#allocation8 + $0xd0] sm:$0xff]
    %v227 = vld [vmem:[#allocation8 + $0xd8] sm:$0xff]
    %v228 = vld [vmem:[#allocation8 + $0xe0] sm:$0xff]
    %v229 = vld [vmem:[#allocation8 + $0xe8] sm:$0xff]
    %v230 = vld [vmem:[#allocation8 + $0xf0] sm:$0xff]
    %v231 = vld [vmem:[#allocation8 + $0xf8] sm:$0xff]
    %v232 = vld [vmem:[#allocation8 + $0x100] sm:$0xff]
    %v233 = vld [vmem:[#allocation8 + $0x108] sm:$0xff]
    %v234 = vld [vmem:[#allocation8 + $0x110] sm:$0xff]
    %v235 = vld [vmem:[#allocation8 + $0x118] sm:$0xff]
    %v236 = vld [vmem:[#allocation8 + $0x120] sm:$0xff]
    %v237 = vld [vmem:[#allocation8 + $0x128] sm:$0xff]
    %v238 = vld [vmem:[#allocation8 + $0x130] sm:$0xff]
    %v239 = vld [vmem:[#allocation8 + $0x138] sm:$0xff]
    %v240 = vld [vmem:[#allocation8 + $0x140] sm:$0xff]
    %v241 = vld [vmem:[#allocation8 + $0x148] sm:$0xff]
    %v242 = vld [vmem:[#allocation8 + $0x150] sm:$0xff]
    %v243 = vld [vmem:[#allocation8 + $0x158] sm:$0xff]
    %v244 = vld [vmem:[#allocation8 + $0x160] sm:$0xff]
    %v245 = vld [vmem:[#allocation8 + $0x168] sm:$0xff]
    %v246 = vld [vmem:[#allocation8 + $0x170] sm:$0xff]
    %v247 = vld [vmem:[#allocation8 + $0x178] sm:$0xff]
    %v248 = vld [vmem:[%s7] sm:$0x7]
    %v249 = vld [vmem:[#allocation10] sm:$0xff]
    %v250 = vld [vmem:[#allocation10 + $0x8] sm:$0xff]
    %v251 = vld [vmem:[#allocation10 + $0x10] sm:$0xff]
    %v252 = vld [vmem:[#allocation10 + $0x18] sm:$0xff]
    %v253 = vld [vmem:[#allocation10 + $0x20] sm:$0xff]
    %v254 = vld [vmem:[#allocation10 + $0x28] sm:$0xff]
    %v255 = vld [vmem:[#allocation10 + $0x30] sm:$0xff]
    %v256 = vld [vmem:[#allocation10 + $0x38] sm:$0xff]
    %v257 = vld [vmem:[#allocation10 + $0x40] sm:$0xff]
    %v258 = vld [vmem:[#allocation10 + $0x48] sm:$0xff]
    %v259 = vld [vmem:[#allocation10 + $0x50] sm:$0xff]
    %v260 = vld [vmem:[#allocation10 + $0x58] sm:$0xff]
    %v261 = vld [vmem:[#allocation10 + $0x60] sm:$0xff]
    %v262 = vld [vmem:[#allocation10 + $0x68] sm:$0xff]
    %v263 = vld [vmem:[#allocation10 + $0x70] sm:$0xff]
    %v264 = vld [vmem:[#allocation10 + $0x78] sm:$0xff]
    %v265 = vld [vmem:[%s9] sm:$0x1]
    %v266 = vld [vmem:[#allocation11] sm:$0xff]
    %v267 = vld [vmem:[#allocation11 + $0x8] sm:$0xff]
    %v268 = vld [vmem:[#allocation11 + $0x10] sm:$0xff]
    %v269 = vld [vmem:[#allocation11 + $0x18] sm:$0xff]
    %v270 = vld [vmem:[#allocation11 + $0x20] sm:$0xff]
    %v271 = vld [vmem:[#allocation11 + $0x28] sm:$0xff]
    %v272 = vld [vmem:[#allocation11 + $0x30] sm:$0xff]
    %v273 = vld [vmem:[#allocation11 + $0x38] sm:$0xff]
    %v274 = vld [vmem:[#allocation11 + $0x40] sm:$0xff]
    %v275 = vld [vmem:[#allocation11 + $0x48] sm:$0xff]
    %v276 = vld [vmem:[#allocation11 + $0x50] sm:$0xff]
    %v277 = vld [vmem:[#allocation11 + $0x58] sm:$0xff]
    %v278 = vld [vmem:[#allocation11 + $0x60] sm:$0xff]
    %v279 = vld [vmem:[#allocation11 + $0x68] sm:$0xff]
    %v280 = vld [vmem:[#allocation11 + $0x70] sm:$0xff]
    %v281 = vld [vmem:[#allocation11 + $0x78] sm:$0xff]
    %v282 = vld [vmem:[%s11] sm:$0x1]
    %v283 = vld [vmem:[%s12] sm:$0x1]
    %v285 = vlaneseq
    %v286 = vshrl.u32 %v285, 7
    %v287 = vsub.s32 0, %v286
    %v288 = vrot.slane %v150, %v287
    %290 = vmatprep.subr.mxu0 0.0
    %291 = vmatpush1.msra.mxu0 %v134
    %292 = vmatprep.subr.mxu0 0.0
    %293 = vmatpush1.msra.mxu0 %v135
    %294 = vmatprep.subr.mxu0 0.0
    %295 = vmatpush1.msra.mxu0 %v136
    %296 = vmatprep.subr.mxu0 0.0
    %297 = vmatpush1.msra.mxu0 %v137
    %298 = vmatprep.subr.mxu0 0.0
    %299 = vmatpush1.msra.mxu0 %v138
    %300 = vmatprep.subr.mxu0 0.0
    %301 = vmatpush1.msra.mxu0 %v139
    %302 = vmatprep.subr.mxu0 0.0
    %303 = vmatpush1.msra.mxu0 %v140
    %304 = vmatprep.subr.mxu0 0.0
    %305 = vmatpush1.msra.mxu0 %v141
    %306 = vmatprep.subr.mxu0 0.0
    %307 = vmatpush1.msra.mxu0 %v142
    %308 = vmatprep.subr.mxu0 0.0
    %309 = vmatpush1.msra.mxu0 %v143
    %310 = vmatprep.subr.mxu0 0.0
    %311 = vmatpush1.msra.mxu0 %v144
    %312 = vmatprep.subr.mxu0 0.0
    %313 = vmatpush1.msra.mxu0 %v145
    %314 = vmatprep.subr.mxu0 0.0
    %315 = vmatpush1.msra.mxu0 %v146
    %316 = vmatprep.subr.mxu0 0.0
    %317 = vmatpush1.msra.mxu0 %v147
    %318 = vmatprep.subr.mxu0 0.0
    %319 = vmatpush1.msra.mxu0 %v148
    %320 = vmatprep.subr.mxu0 0.0
    %321 = vmatpush1.msra.mxu0 %v149
    %322 = vmatprep.subr.mxu0 0.0
    %323 = vmatpush1.msra.mxu0 0.0
    %324 = vmatprep.subr.mxu0 0.0
    %325 = vmatpush1.msra.mxu0 0.0
    %326 = vmatprep.subr.mxu0 0.0
    %327 = vmatpush1.msra.mxu0 0.0
    %328 = vmatprep.subr.mxu0 0.0
    %329 = vmatpush1.msra.mxu0 0.0
    %330 = vmatprep.subr.mxu0 0.0
    %331 = vmatpush1.msra.mxu0 0.0
    %332 = vmatprep.subr.mxu0 0.0
    %333 = vmatpush1.msra.mxu0 0.0
    %334 = vmatprep.subr.mxu0 0.0
    %335 = vmatpush1.msra.mxu0 0.0
    %336 = vmatprep.subr.mxu0 0.0
    %337 = vmatpush1.msra.mxu0 0.0
    %338 = vmatprep.subr.mxu0 0.0
    %339 = vmatpush1.msra.mxu0 0.0
    %340 = vmatprep.subr.mxu0 0.0
    %341 = vmatpush1.msra.mxu0 0.0
    %342 = vmatprep.subr.mxu0 0.0
    %343 = vmatpush1.msra.mxu0 0.0
    %344 = vmatprep.subr.mxu0 0.0
    %345 = vmatpush1.msra.mxu0 0.0
    %346 = vmatprep.subr.mxu0 0.0
    %347 = vmatpush1.msra.mxu0 0.0
    %348 = vmatprep.subr.mxu0 0.0
    %349 = vmatpush1.msra.mxu0 0.0
    %350 = vmatprep.subr.mxu0 0.0
    %351 = vmatpush1.msra.mxu0 0.0
    %352 = vmatprep.subr.mxu0 0.0
    %353 = vmatpush1.msra.mxu0 0.0
    %354 = vmatprep.mubr.f32.mxu0 0.0
    %355 = vmatmul.mubr.f32.gmra.mrb[0].mxu0 %v130
    %v356 = vpop.f32.mrb[0].mxu0
    %v357 = vadd.f32 %v288, %v356
    %v358 = vpop.f32.mrb[0].mxu0
    %359 = vmatprep.mubr.f32.mxu0 0.0
    %360 = vmatmul.mubr.f32.gmra.mrb[0].mxu0 %v131
    %v361 = vpop.f32.mrb[0].mxu0
    %v362 = vadd.f32 %v288, %v361
    %v363 = vpop.f32.mrb[0].mxu0
    %364 = vdwg.mxu0
    %v365 = vmax.f32 %v357, 0.0
    %v366 = vmax.f32 %v362, 0.0
    %v368 = vlaneseq
    %v369 = vshrl.u32 %v368, 7
    %v370 = vsub.s32 0, %v369
    %v371 = vrot.slane %v199, %v370
    %v372 = vlaneseq
    %v373 = vshrl.u32 %v372, 7
    %v374 = vsub.s32 1, %v373
    %v375 = vrot.slane %v199, %v374
    %v376 = vlaneseq
    %v377 = vshrl.u32 %v376, 7
    %v378 = vsub.s32 2, %v377
    %v379 = vrot.slane %v199, %v378
    %383 = vmatprep.subr.mxu0 %v152
    %384 = vmatpush1.msra.mxu0 %v151
    %385 = vmatprep.subr.mxu0 %v155
    %386 = vmatpush1.msra.mxu0 %v154
    %387 = vmatprep.subr.mxu0 %v158
    %388 = vmatpush1.msra.mxu0 %v157
    %389 = vmatprep.subr.mxu0 %v161
    %390 = vmatpush1.msra.mxu0 %v160
    %391 = vmatprep.subr.mxu0 %v164
    %392 = vmatpush1.msra.mxu0 %v163
    %393 = vmatprep.subr.mxu0 %v167
    %394 = vmatpush1.msra.mxu0 %v166
    %395 = vmatprep.subr.mxu0 %v170
    %396 = vmatpush1.msra.mxu0 %v169
    %397 = vmatprep.subr.mxu0 %v173
    %398 = vmatpush1.msra.mxu0 %v172
    %399 = vmatprep.subr.mxu0 %v176
    %400 = vmatpush1.msra.mxu0 %v175
    %401 = vmatprep.subr.mxu0 %v179
    %402 = vmatpush1.msra.mxu0 %v178
    %403 = vmatprep.subr.mxu0 %v182
    %404 = vmatpush1.msra.mxu0 %v181
    %405 = vmatprep.subr.mxu0 %v185
    %406 = vmatpush1.msra.mxu0 %v184
    %407 = vmatprep.subr.mxu0 %v188
    %408 = vmatpush1.msra.mxu0 %v187
    %409 = vmatprep.subr.mxu0 %v191
    %410 = vmatpush1.msra.mxu0 %v190
    %411 = vmatprep.subr.mxu0 %v194
    %412 = vmatpush1.msra.mxu0 %v193
    %413 = vmatprep.subr.mxu0 %v197
    %414 = vmatpush1.msra.mxu0 %v196
    %415 = vmatprep.subr.mxu0 0.0
    %416 = vmatpush1.msra.mxu0 0.0
    %417 = vmatprep.subr.mxu0 0.0
    %418 = vmatpush1.msra.mxu0 0.0
    %419 = vmatprep.subr.mxu0 0.0
    %420 = vmatpush1.msra.mxu0 0.0
    %421 = vmatprep.subr.mxu0 0.0
    %422 = vmatpush1.msra.mxu0 0.0
    %423 = vmatprep.subr.mxu0 0.0
    %424 = vmatpush1.msra.mxu0 0.0
    %425 = vmatprep.subr.mxu0 0.0
    %426 = vmatpush1.msra.mxu0 0.0
    %427 = vmatprep.subr.mxu0 0.0
    %428 = vmatpush1.msra.mxu0 0.0
    %429 = vmatprep.subr.mxu0 0.0
    %430 = vmatpush1.msra.mxu0 0.0
    %431 = vmatprep.subr.mxu0 0.0
    %432 = vmatpush1.msra.mxu0 0.0
    %433 = vmatprep.subr.mxu0 0.0
    %434 = vmatpush1.msra.mxu0 0.0
    %435 = vmatprep.subr.mxu0 0.0
    %436 = vmatpush1.msra.mxu0 0.0
    %437 = vmatprep.subr.mxu0 0.0
    %438 = vmatpush1.msra.mxu0 0.0
    %439 = vmatprep.subr.mxu0 0.0
    %440 = vmatpush1.msra.mxu0 0.0
    %441 = vmatprep.subr.mxu0 0.0
    %442 = vmatpush1.msra.mxu0 0.0
    %443 = vmatprep.subr.mxu0 0.0
    %444 = vmatpush1.msra.mxu0 0.0
    %445 = vmatprep.subr.mxu0 0.0
    %446 = vmatpush1.msra.mxu0 0.0
    %447 = vmatprep.mubr.f32.mxu0 0.0
    %448 = vmatmul.mubr.f32.gmra.mrb[0].mxu0 %v365
    %v449 = vpop.f32.mrb[0].mxu0
    %v450 = vadd.f32 %v371, %v449
    %v451 = vpop.f32.mrb[0].mxu0
    %v452 = vadd.f32 %v375, %v451
    %453 = vmatprep.mubr.f32.mxu0 0.0
    %454 = vmatmul.mubr.f32.gmra.mrb[0].mxu0 %v366
    %v455 = vpop.f32.mrb[0].mxu0
    %v456 = vadd.f32 %v371, %v455
    %v457 = vpop.f32.mrb[0].mxu0
    %v458 = vadd.f32 %v375, %v457
    %459 = vdwg.mxu0
    %460 = vmatprep.subr.mxu0 0.0
    %461 = vmatpush1.msra.mxu0 %v153
    %462 = vmatprep.subr.mxu0 0.0
    %463 = vmatpush1.msra.mxu0 %v156
    %464 = vmatprep.subr.mxu0 0.0
    %465 = vmatpush1.msra.mxu0 %v159
    %466 = vmatprep.subr.mxu0 0.0
    %467 = vmatpush1.msra.mxu0 %v162
    %468 = vmatprep.subr.mxu0 0.0
    %469 = vmatpush1.msra.mxu0 %v165
    %470 = vmatprep.subr.mxu0 0.0
    %471 = vmatpush1.msra.mxu0 %v168
    %472 = vmatprep.subr.mxu0 0.0
    %473 = vmatpush1.msra.mxu0 %v171
    %474 = vmatprep.subr.mxu0 0.0
    %475 = vmatpush1.msra.mxu0 %v174
    %476 = vmatprep.subr.mxu0 0.0
    %477 = vmatpush1.msra.mxu0 %v177
    %478 = vmatprep.subr.mxu0 0.0
    %479 = vmatpush1.msra.mxu0 %v180
    %480 = vmatprep.subr.mxu0 0.0
    %481 = vmatpush1.msra.mxu0 %v183
    %482 = vmatprep.subr.mxu0 0.0
    %483 = vmatpush1.msra.mxu0 %v186
    %484 = vmatprep.subr.mxu0 0.0
    %485 = vmatpush1.msra.mxu0 %v189
    %486 = vmatprep.subr.mxu0 0.0
    %487 = vmatpush1.msra.mxu0 %v192
    %488 = vmatprep.subr.mxu0 0.0
    %489 = vmatpush1.msra.mxu0 %v195
    %490 = vmatprep.subr.mxu0 0.0
    %491 = vmatpush1.msra.mxu0 %v198
    %492 = vmatprep.subr.mxu0 0.0
    %493 = vmatpush1.msra.mxu0 0.0
    %494 = vmatprep.subr.mxu0 0.0
    %495 = vmatpush1.msra.mxu0 0.0
    %496 = vmatprep.subr.mxu0 0.0
    %497 = vmatpush1.msra.mxu0 0.0
    %498 = vmatprep.subr.mxu0 0.0
    %499 = vmatpush1.msra.mxu0 0.0
    %500 = vmatprep.subr.mxu0 0.0
    %501 = vmatpush1.msra.mxu0 0.0
    %502 = vmatprep.subr.mxu0 0.0
    %503 = vmatpush1.msra.mxu0 0.0
    %504 = vmatprep.subr.mxu0 0.0
    %505 = vmatpush1.msra.mxu0 0.0
    %506 = vmatprep.subr.mxu0 0.0
    %507 = vmatpush1.msra.mxu0 0.0
    %508 = vmatprep.subr.mxu0 0.0
    %509 = vmatpush1.msra.mxu0 0.0
    %510 = vmatprep.subr.mxu0 0.0
    %511 = vmatpush1.msra.mxu0 0.0
    %512 = vmatprep.subr.mxu0 0.0
    %513 = vmatpush1.msra.mxu0 0.0
    %514 = vmatprep.subr.mxu0 0.0
    %515 = vmatpush1.msra.mxu0 0.0
    %516 = vmatprep.subr.mxu0 0.0
    %517 = vmatpush1.msra.mxu0 0.0
    %518 = vmatprep.subr.mxu0 0.0
    %519 = vmatpush1.msra.mxu0 0.0
    %520 = vmatprep.subr.mxu0 0.0
    %521 = vmatpush1.msra.mxu0 0.0
    %522 = vmatprep.subr.mxu0 0.0
    %523 = vmatpush1.msra.mxu0 0.0
    %524 = vmatprep.mubr.f32.mxu0 0.0
    %525 = vmatmul.mubr.f32.gmra.mrb[0].mxu0 %v365
    %v526 = vpop.f32.mrb[0].mxu0
    %v527 = vadd.f32 %v379, %v526
    %v528 = vpop.f32.mrb[0].mxu0
    %529 = vmatprep.mubr.f32.mxu0 0.0
    %530 = vmatmul.mubr.f32.gmra.mrb[0].mxu0 %v366
    %v531 = vpop.f32.mrb[0].mxu0
    %v532 = vadd.f32 %v379, %v531
    %v533 = vpop.f32.mrb[0].mxu0
    %534 = vdwg.mxu0
    %v536 = vlaneseq
    %v537 = vshrl.u32 %v536, 7
    %v538 = vsub.s32 0, %v537
    %v539 = vrot.slane %v248, %v538
    %v540 = vlaneseq
    %v541 = vshrl.u32 %v540, 7
    %v542 = vsub.s32 1, %v541
    %v543 = vrot.slane %v248, %v542
    %v544 = vlaneseq
    %v545 = vshrl.u32 %v544, 7
    %v546 = vsub.s32 2, %v545
    %v547 = vrot.slane %v248, %v546
    %551 = vmatprep.subr.mxu0 %v201
    %552 = vmatpush1.msra.mxu0 %v200
    %553 = vmatprep.subr.mxu0 %v204
    %554 = vmatpush1.msra.mxu0 %v203
    %555 = vmatprep.subr.mxu0 %v207
    %556 = vmatpush1.msra.mxu0 %v206
    %557 = vmatprep.subr.mxu0 %v210
    %558 = vmatpush1.msra.mxu0 %v209
    %559 = vmatprep.subr.mxu0 %v213
    %560 = vmatpush1.msra.mxu0 %v212
    %561 = vmatprep.subr.mxu0 %v216
    %562 = vmatpush1.msra.mxu0 %v215
    %563 = vmatprep.subr.mxu0 %v219
    %564 = vmatpush1.msra.mxu0 %v218
    %565 = vmatprep.subr.mxu0 %v222
    %566 = vmatpush1.msra.mxu0 %v221
    %567 = vmatprep.subr.mxu0 %v225
    %568 = vmatpush1.msra.mxu0 %v224
    %569 = vmatprep.subr.mxu0 %v228
    %570 = vmatpush1.msra.mxu0 %v227
    %571 = vmatprep.subr.mxu0 %v231
    %572 = vmatpush1.msra.mxu0 %v230
    %573 = vmatprep.subr.mxu0 %v234
    %574 = vmatpush1.msra.mxu0 %v233
    %575 = vmatprep.subr.mxu0 %v237
    %576 = vmatpush1.msra.mxu0 %v236
    %577 = vmatprep.subr.mxu0 %v240
    %578 = vmatpush1.msra.mxu0 %v239
    %579 = vmatprep.subr.mxu0 %v243
    %580 = vmatpush1.msra.mxu0 %v242
    %581 = vmatprep.subr.mxu0 %v246
    %582 = vmatpush1.msra.mxu0 %v245
    %583 = vmatprep.subr.mxu0 0.0
    %584 = vmatpush1.msra.mxu0 0.0
    %585 = vmatprep.subr.mxu0 0.0
    %586 = vmatpush1.msra.mxu0 0.0
    %587 = vmatprep.subr.mxu0 0.0
    %588 = vmatpush1.msra.mxu0 0.0
    %589 = vmatprep.subr.mxu0 0.0
    %590 = vmatpush1.msra.mxu0 0.0
    %591 = vmatprep.subr.mxu0 0.0
    %592 = vmatpush1.msra.mxu0 0.0
    %593 = vmatprep.subr.mxu0 0.0
    %594 = vmatpush1.msra.mxu0 0.0
    %595 = vmatprep.subr.mxu0 0.0
    %596 = vmatpush1.msra.mxu0 0.0
    %597 = vmatprep.subr.mxu0 0.0
    %598 = vmatpush1.msra.mxu0 0.0
    %599 = vmatprep.subr.mxu0 0.0
    %600 = vmatpush1.msra.mxu0 0.0
    %601 = vmatprep.subr.mxu0 0.0
    %602 = vmatpush1.msra.mxu0 0.0
    %603 = vmatprep.subr.mxu0 0.0
    %604 = vmatpush1.msra.mxu0 0.0
    %605 = vmatprep.subr.mxu0 0.0
    %606 = vmatpush1.msra.mxu0 0.0
    %607 = vmatprep.subr.mxu0 0.0
    %608 = vmatpush1.msra.mxu0 0.0
    %609 = vmatprep.subr.mxu0 0.0
    %610 = vmatpush1.msra.mxu0 0.0
    %611 = vmatprep.subr.mxu0 0.0
    %612 = vmatpush1.msra.mxu0 0.0
    %613 = vmatprep.subr.mxu0 0.0
    %614 = vmatpush1.msra.mxu0 0.0
    %615 = vmatprep.mubr.f32.mxu0 0.0
    %616 = vmatmul.mubr.f32.gmra.mrb[0].mxu0 %v132
    %v617 = vpop.f32.mrb[0].mxu0
    %v618 = vadd.f32 %v539, %v617
    %v619 = vpop.f32.mrb[0].mxu0
    %v620 = vadd.f32 %v543, %v619
    %621 = vmatprep.mubr.f32.mxu0 0.0
    %622 = vmatmul.mubr.f32.gmra.mrb[0].mxu0 %v133
    %v623 = vpop.f32.mrb[0].mxu0
    %v624 = vadd.f32 %v539, %v623
    %v625 = vpop.f32.mrb[0].mxu0
    %v626 = vadd.f32 %v543, %v625
    %627 = vdwg.mxu0
    %628 = vmatprep.subr.mxu0 0.0
    %629 = vmatpush1.msra.mxu0 %v202
    %630 = vmatprep.subr.mxu0 0.0
    %631 = vmatpush1.msra.mxu0 %v205
    %632 = vmatprep.subr.mxu0 0.0
    %633 = vmatpush1.msra.mxu0 %v208
    %634 = vmatprep.subr.mxu0 0.0
    %635 = vmatpush1.msra.mxu0 %v211
    %636 = vmatprep.subr.mxu0 0.0
    %637 = vmatpush1.msra.mxu0 %v214
    %638 = vmatprep.subr.mxu0 0.0
    %639 = vmatpush1.msra.mxu0 %v217
    %640 = vmatprep.subr.mxu0 0.0
    %641 = vmatpush1.msra.mxu0 %v220
    %642 = vmatprep.subr.mxu0 0.0
    %643 = vmatpush1.msra.mxu0 %v223
    %644 = vmatprep.subr.mxu0 0.0
    %645 = vmatpush1.msra.mxu0 %v226
    %646 = vmatprep.subr.mxu0 0.0
    %647 = vmatpush1.msra.mxu0 %v229
    %648 = vmatprep.subr.mxu0 0.0
    %649 = vmatpush1.msra.mxu0 %v232
    %650 = vmatprep.subr.mxu0 0.0
    %651 = vmatpush1.msra.mxu0 %v235
    %652 = vmatprep.subr.mxu0 0.0
    %653 = vmatpush1.msra.mxu0 %v238
    %654 = vmatprep.subr.mxu0 0.0
    %655 = vmatpush1.msra.mxu0 %v241
    %656 = vmatprep.subr.mxu0 0.0
    %657 = vmatpush1.msra.mxu0 %v244
    %658 = vmatprep.subr.mxu0 0.0
    %659 = vmatpush1.msra.mxu0 %v247
    %660 = vmatprep.subr.mxu0 0.0
    %661 = vmatpush1.msra.mxu0 0.0
    %662 = vmatprep.subr.mxu0 0.0
    %663 = vmatpush1.msra.mxu0 0.0
    %664 = vmatprep.subr.mxu0 0.0
    %665 = vmatpush1.msra.mxu0 0.0
    %666 = vmatprep.subr.mxu0 0.0
    %667 = vmatpush1.msra.mxu0 0.0
    %668 = vmatprep.subr.mxu0 0.0
    %669 = vmatpush1.msra.mxu0 0.0
    %670 = vmatprep.subr.mxu0 0.0
    %671 = vmatpush1.msra.mxu0 0.0
    %672 = vmatprep.subr.mxu0 0.0
    %673 = vmatpush1.msra.mxu0 0.0
    %674 = vmatprep.subr.mxu0 0.0
    %675 = vmatpush1.msra.mxu0 0.0
    %676 = vmatprep.subr.mxu0 0.0
    %677 = vmatpush1.msra.mxu0 0.0
    %678 = vmatprep.subr.mxu0 0.0
    %679 = vmatpush1.msra.mxu0 0.0
    %680 = vmatprep.subr.mxu0 0.0
    %681 = vmatpush1.msra.mxu0 0.0
    %682 = vmatprep.subr.mxu0 0.0
    %683 = vmatpush1.msra.mxu0 0.0
    %684 = vmatprep.subr.mxu0 0.0
    %685 = vmatpush1.msra.mxu0 0.0
    %686 = vmatprep.subr.mxu0 0.0
    %687 = vmatpush1.msra.mxu0 0.0
    %688 = vmatprep.subr.mxu0 0.0
    %689 = vmatpush1.msra.mxu0 0.0
    %690 = vmatprep.subr.mxu0 0.0
    %691 = vmatpush1.msra.mxu0 0.0
    %692 = vmatprep.mubr.f32.mxu0 0.0
    %693 = vmatmul.mubr.f32.gmra.mrb[0].mxu0 %v132
    %v694 = vpop.f32.mrb[0].mxu0
    %v695 = vadd.f32 %v547, %v694
    %v696 = vpop.f32.mrb[0].mxu0
    %697 = vmatprep.mubr.f32.mxu0 0.0
    %698 = vmatmul.mubr.f32.gmra.mrb[0].mxu0 %v133
    %v699 = vpop.f32.mrb[0].mxu0
    %v700 = vadd.f32 %v547, %v699
    %v701 = vpop.f32.mrb[0].mxu0
    %702 = vdwg.mxu0
    %v703 = vadd.f32 %v450, %v618
    %v704 = vadd.f32 %v456, %v624
    %v705 = vxor.u32 %v703, 2147483648
    %v706 = vxor.u32 %v704, 2147483648
    %v707 = vmul.f32 %v705, 1.442695
    %v708 = vpow.pop %v707
    %v709 = vmul.f32 %v706, 1.442695
    %v710 = vpow.pop %v709
    %v711 = vadd.f32 %v708, 1.0
    %v712 = vadd.f32 %v710, 1.0
    %v713 = vrcp.pop %v711
    %v714 = vmul.f32 1.0, %v713
    %v715 = vrcp.pop %v712
    %v716 = vmul.f32 1.0, %v715
    %v717 = vadd.f32 %v452, %v620
    %v718 = vadd.f32 %v458, %v626
    %v719 = vxor.u32 %v717, 2147483648
    %v720 = vxor.u32 %v718, 2147483648
    %v721 = vmul.f32 %v719, 1.442695
    %v722 = vpow.pop %v721
    %v723 = vmul.f32 %v720, 1.442695
    %v724 = vpow.pop %v723
    %v725 = vadd.f32 %v722, 1.0
    %v726 = vadd.f32 %v724, 1.0
    %v727 = vrcp.pop %v725
    %v728 = vmul.f32 1.0, %v727
    %v729 = vrcp.pop %v726
    %v730 = vmul.f32 1.0, %v729
    %v731 = vmul.f32 %v714, %v695
    %v732 = vmul.f32 %v716, %v700
    %v733 = vadd.f32 %v527, %v731
    %v734 = vadd.f32 %v532, %v732
    %v735 = vtanh.pop %v733
    %v736 = vtanh.pop %v734
    %v737 = vsub.f32 1.0, %v728
    %v738 = vsub.f32 1.0, %v730
    %v739 = vmul.f32 %v737, %v735
    %v740 = vmul.f32 %v738, %v736
    %v741 = vmul.f32 %v728, %v132
    %v742 = vmul.f32 %v730, %v133
    %v743 = vadd.f32 %v739, %v741
    %v744 = vadd.f32 %v740, %v742
    %v745 = vmax.f32 %v743, 0.0
    %v746 = vmax.f32 %v744, 0.0
    %v748 = vlaneseq
    %v749 = vshrl.u32 %v748, 7
    %v750 = vsub.s32 0, %v749
    %v751 = vrot.slane %v265, %v750
    %753 = vmatprep.subr.mxu0 0.0
    %754 = vmatpush1.msra.mxu0 %v249
    %755 = vmatprep.subr.mxu0 0.0
    %756 = vmatpush1.msra.mxu0 %v250
    %757 = vmatprep.subr.mxu0 0.0
    %758 = vmatpush1.msra.mxu0 %v251
    %759 = vmatprep.subr.mxu0 0.0
    %760 = vmatpush1.msra.mxu0 %v252
    %761 = vmatprep.subr.mxu0 0.0
    %762 = vmatpush1.msra.mxu0 %v253
    %763 = vmatprep.subr.mxu0 0.0
    %764 = vmatpush1.msra.mxu0 %v254
    %765 = vmatprep.subr.mxu0 0.0
    %766 = vmatpush1.msra.mxu0 %v255
    %767 = vmatprep.subr.mxu0 0.0
    %768 = vmatpush1.msra.mxu0 %v256
    %769 = vmatprep.subr.mxu0 0.0
    %770 = vmatpush1.msra.mxu0 %v257
    %771 = vmatprep.subr.mxu0 0.0
    %772 = vmatpush1.msra.mxu0 %v258
    %773 = vmatprep.subr.mxu0 0.0
    %774 = vmatpush1.msra.mxu0 %v259
    %775 = vmatprep.subr.mxu0 0.0
    %776 = vmatpush1.msra.mxu0 %v260
    %777 = vmatprep.subr.mxu0 0.0
    %778 = vmatpush1.msra.mxu0 %v261
    %779 = vmatprep.subr.mxu0 0.0
    %780 = vmatpush1.msra.mxu0 %v262
    %781 = vmatprep.subr.mxu0 0.0
    %782 = vmatpush1.msra.mxu0 %v263
    %783 = vmatprep.subr.mxu0 0.0
    %784 = vmatpush1.msra.mxu0 %v264
    %785 = vmatprep.subr.mxu0 0.0
    %786 = vmatpush1.msra.mxu0 0.0
    %787 = vmatprep.subr.mxu0 0.0
    %788 = vmatpush1.msra.mxu0 0.0
    %789 = vmatprep.subr.mxu0 0.0
    %790 = vmatpush1.msra.mxu0 0.0
    %791 = vmatprep.subr.mxu0 0.0
    %792 = vmatpush1.msra.mxu0 0.0
    %793 = vmatprep.subr.mxu0 0.0
    %794 = vmatpush1.msra.mxu0 0.0
    %795 = vmatprep.subr.mxu0 0.0
    %796 = vmatpush1.msra.mxu0 0.0
    %797 = vmatprep.subr.mxu0 0.0
    %798 = vmatpush1.msra.mxu0 0.0
    %799 = vmatprep.subr.mxu0 0.0
    %800 = vmatpush1.msra.mxu0 0.0
    %801 = vmatprep.subr.mxu0 0.0
    %802 = vmatpush1.msra.mxu0 0.0
    %803 = vmatprep.subr.mxu0 0.0
    %804 = vmatpush1.msra.mxu0 0.0
    %805 = vmatprep.subr.mxu0 0.0
    %806 = vmatpush1.msra.mxu0 0.0
    %807 = vmatprep.subr.mxu0 0.0
    %808 = vmatpush1.msra.mxu0 0.0
    %809 = vmatprep.subr.mxu0 0.0
    %810 = vmatpush1.msra.mxu0 0.0
    %811 = vmatprep.subr.mxu0 0.0
    %812 = vmatpush1.msra.mxu0 0.0
    %813 = vmatprep.subr.mxu0 0.0
    %814 = vmatpush1.msra.mxu0 0.0
    %815 = vmatprep.subr.mxu0 0.0
    %816 = vmatpush1.msra.mxu0 0.0
    %817 = vmatprep.mubr.f32.mxu0 0.0
    %818 = vmatmul.mubr.f32.gmra.mrb[0].mxu0 %v745
    %v819 = vpop.f32.mrb[0].mxu0
    %v820 = vadd.f32 %v751, %v819
    %v821 = vpop.f32.mrb[0].mxu0
    %822 = vmatprep.mubr.f32.mxu0 0.0
    %823 = vmatmul.mubr.f32.gmra.mrb[0].mxu0 %v746
    %v824 = vpop.f32.mrb[0].mxu0
    %v825 = vadd.f32 %v751, %v824
    %v826 = vpop.f32.mrb[0].mxu0
    %827 = vdwg.mxu0
    %v828 = vmax.f32 %v820, 0.0
    %v829 = vmax.f32 %v825, 0.0
    %v831 = vlaneseq
    %v832 = vshrl.u32 %v831, 7
    %v833 = vsub.s32 0, %v832
    %v834 = vrot.slane %v282, %v833
    %836 = vmatprep.subr.mxu0 0.0
    %837 = vmatpush1.msra.mxu0 %v266
    %838 = vmatprep.subr.mxu0 0.0
    %839 = vmatpush1.msra.mxu0 %v267
    %840 = vmatprep.subr.mxu0 0.0
    %841 = vmatpush1.msra.mxu0 %v268
    %842 = vmatprep.subr.mxu0 0.0
    %843 = vmatpush1.msra.mxu0 %v269
    %844 = vmatprep.subr.mxu0 0.0
    %845 = vmatpush1.msra.mxu0 %v270
    %846 = vmatprep.subr.mxu0 0.0
    %847 = vmatpush1.msra.mxu0 %v271
    %848 = vmatprep.subr.mxu0 0.0
    %849 = vmatpush1.msra.mxu0 %v272
    %850 = vmatprep.subr.mxu0 0.0
    %851 = vmatpush1.msra.mxu0 %v273
    %852 = vmatprep.subr.mxu0 0.0
    %853 = vmatpush1.msra.mxu0 %v274
    %854 = vmatprep.subr.mxu0 0.0
    %855 = vmatpush1.msra.mxu0 %v275
    %856 = vmatprep.subr.mxu0 0.0
    %857 = vmatpush1.msra.mxu0 %v276
    %858 = vmatprep.subr.mxu0 0.0
    %859 = vmatpush1.msra.mxu0 %v277
    %860 = vmatprep.subr.mxu0 0.0
    %861 = vmatpush1.msra.mxu0 %v278
    %862 = vmatprep.subr.mxu0 0.0
    %863 = vmatpush1.msra.mxu0 %v279
    %864 = vmatprep.subr.mxu0 0.0
    %865 = vmatpush1.msra.mxu0 %v280
    %866 = vmatprep.subr.mxu0 0.0
    %867 = vmatpush1.msra.mxu0 %v281
    %868 = vmatprep.subr.mxu0 0.0
    %869 = vmatpush1.msra.mxu0 0.0
    %870 = vmatprep.subr.mxu0 0.0
    %871 = vmatpush1.msra.mxu0 0.0
    %872 = vmatprep.subr.mxu0 0.0
    %873 = vmatpush1.msra.mxu0 0.0
    %874 = vmatprep.subr.mxu0 0.0
    %875 = vmatpush1.msra.mxu0 0.0
    %876 = vmatprep.subr.mxu0 0.0
    %877 = vmatpush1.msra.mxu0 0.0
    %878 = vmatprep.subr.mxu0 0.0
    %879 = vmatpush1.msra.mxu0 0.0
    %880 = vmatprep.subr.mxu0 0.0
    %881 = vmatpush1.msra.mxu0 0.0
    %882 = vmatprep.subr.mxu0 0.0
    %883 = vmatpush1.msra.mxu0 0.0
    %884 = vmatprep.subr.mxu0 0.0
    %885 = vmatpush1.msra.mxu0 0.0
    %886 = vmatprep.subr.mxu0 0.0
    %887 = vmatpush1.msra.mxu0 0.0
    %888 = vmatprep.subr.mxu0 0.0
    %889 = vmatpush1.msra.mxu0 0.0
    %890 = vmatprep.subr.mxu0 0.0
    %891 = vmatpush1.msra.mxu0 0.0
    %892 = vmatprep.subr.mxu0 0.0
    %893 = vmatpush1.msra.mxu0 0.0
    %894 = vmatprep.subr.mxu0 0.0
    %895 = vmatpush1.msra.mxu0 0.0
    %896 = vmatprep.subr.mxu0 0.0
    %897 = vmatpush1.msra.mxu0 0.0
    %898 = vmatprep.subr.mxu0 0.0
    %899 = vmatpush1.msra.mxu0 0.0
    %900 = vmatprep.mubr.f32.mxu0 0.0
    %901 = vmatmul.mubr.f32.gmra.mrb[0].mxu0 %v828
    %v902 = vpop.f32.mrb[0].mxu0
    %v903 = vadd.f32 %v834, %v902
    %v904 = vpop.f32.mrb[0].mxu0
    %905 = vmatprep.mubr.f32.mxu0 0.0
    %906 = vmatmul.mubr.f32.gmra.mrb[0].mxu0 %v829
    %v907 = vpop.f32.mrb[0].mxu0
    %v908 = vadd.f32 %v834, %v907
    %v909 = vpop.f32.mrb[0].mxu0
    %910 = vdwg.mxu0
    %v911 = vmul.f32 %v903, 1.442695
    %v912 = vpow.pop %v911
    %v913 = vmul.f32 %v908, 1.442695
    %v914 = vpow.pop %v913
    %915 = vmax.xlane.f32.xlu0 %v912
    %v916 = vpop.xlane.xlu0 %915
    %917 = vmax.xlane.f32.xlu0 %v914
    %v918 = vpop.xlane.xlu0 %917
    %v919 = vsub.f32 %v912, %v916
    %v920 = vsub.f32 %v914, %v918
    %v921 = vmul.f32 %v919, 1.442695
    %v922 = vpow.pop %v921
    %v923 = vmul.f32 %v920, 1.442695
    %v924 = vpow.pop %v923
    %v926 = vlaneseq
    %v927 = vshrl.u32 %v926, 7
    %v928 = vsub.s32 0, %v927
    %v929 = vrot.slane %v283, %v928
    %v931 = vmul.f32 %v922, %v929
    %v932 = vmul.f32 %v924, %v929
    %933 = vadd.xlane.f32.xlu0 %v931
    %v934 = vpop.xlane.xlu0 %933
    %935 = vadd.xlane.f32.xlu0 %v932
    %v936 = vpop.xlane.xlu0 %935
    %v937 = vrcp.pop %v934
    %v938 = vrcp.pop %v936
    %v939 = vmul.f32 %v934, %v937
    %v940 = vmul.f32 %v936, %v938
    %v941 = vsub.f32 2.0, %v939
    %v942 = vsub.f32 2.0, %v940
    %v943 = vmul.f32 %v937, %v941
    %v944 = vmul.f32 %v938, %v942
    %v945 = vmul.f32 %v931, %v943
    %v946 = vmul.f32 %v932, %v944
    %947 = vst [vmem:[#allocation13] sm:$0xff] %v945
    %948 = vst [vmem:[#allocation13 + $0x8] sm:$0xff] %v946
    %949 = vst [vmem:[#allocation14] sm:$0xff] %v745
    %950 = vst [vmem:[#allocation14 + $0x8] sm:$0xff] %v746
    // Predicated region
    $region78: #{tpu_custom_call.1} parent=1 // pred_check
      _
    $region79: #{tpu_custom_call.1} parent=1 // pred_check_branch
      %952 = sbr.rel (0) target = $region81
    $region80: #{tpu_custom_call.1} parent=1 // pred_region
      %s954 = ssub.s32 256, 256
      %955 = vsyncadd [#allocation4], %s954
      %s956 = sshll.u32 [#allocation13], 4
      %s957 = int_to_ptr.vmem [resolvable:$true] %s956
      %962 = dma.vmem_to_hbm [thread:$0]  %s957, 256, %s13, [#allocation4], 128, 128, 8
    $region81: #{tpu_custom_call.1} parent=1 // pred_fallthru
      _
    // Predicated region
    $region82: #{tpu_custom_call.1} parent=1 // pred_check
      _
    $region83: #{tpu_custom_call.1} parent=1 // pred_check_branch
      %964 = sbr.rel (0) target = $region85
    $region84: #{tpu_custom_call.1} parent=1 // pred_region
      %s966 = ssub.s32 256, 256
      %967 = vsyncadd [#allocation15], %s966
      %s968 = sshll.u32 [#allocation14], 4
      %s969 = int_to_ptr.vmem [resolvable:$true] %s968
      %974 = dma.vmem_to_hbm [thread:$0]  %s969, 256, %s14, [#allocation15], 128, 128, 8
    $region85: #{tpu_custom_call.1} parent=1 // pred_fallthru
      _
    // Predicated region
    $region86: #{tpu_custom_call.1} parent=1 // pred_check
      _
    $region87: #{tpu_custom_call.1} parent=1 // pred_check_branch
      %976 = sbr.rel (0) target = $region89
    $region88: #{tpu_custom_call.1} parent=1 // pred_region
      %977 = dma.done [#allocation4], 256
    $region89: #{tpu_custom_call.1} parent=1 // pred_fallthru
      _
    // Predicated region
    $region90: #{tpu_custom_call.1} parent=1 // pred_check
      _
    $region91: #{tpu_custom_call.1} parent=1 // pred_check_branch
      %979 = sbr.rel (0) target = $region93
    $region92: #{tpu_custom_call.1} parent=1 // pred_region
      %980 = dma.done [#allocation15], 256
    $region93: #{tpu_custom_call.1} parent=1 // pred_fallthru
      _
    %981 = vsyncpa [#allocation3], 1
    %982 = vsyncpa [#allocation6], 1
    %983 = vsyncpa [#allocation9], 1
    %984 = vsyncpa [#allocation12], 1
    %985 = vsyncpa [#allocation4], 1
    %986 = vsyncpa [#allocation15], 1

</llo_original>
